<compile_context>
chip_gen: v7x
topology: tpu7x:2x2x1
jax: 0.10.0
libtpu: 0.0.40
codegen_flags: <defaults>
</compile_context>

<pallas_src>
import functools

import jax
import jax.numpy as jnp
from jax.experimental import pallas as pl
from jax.experimental.pallas import tpu as pltpu

EPS = 1e-5
NEURONS = (300, 300, 300)
HPAD = 384          # 300 padded up to a multiple of 128 lanes
OUTPAD = 128        # action logits padded to one full lane width
NEG_INF = -1e30     # softmax mask value for padded logit lanes
SLAB_ROWS = 16      # 12 used rows, padded to a multiple of 8 sublanes

# parameter-slab row layout
ROW_G0, ROW_B0 = 0, 1                 # input BatchNorm gamma / beta  (input_dims wide)
ROW_B1, ROW_G1, ROW_BE1 = 2, 3, 4     # Linear1 bias, BN1 gamma, BN1 beta
ROW_B2, ROW_G2, ROW_BE2 = 5, 6, 7     # Linear2 bias, BN2 gamma, BN2 beta
ROW_B3, ROW_G3, ROW_BE3 = 8, 9, 10    # Linear3 bias, BN3 gamma, BN3 beta
ROW_B4 = 11                           # output bias (+ -1e30 mask on padded lanes)


def _bn(h, gamma, beta, inv_n):
    """BatchNorm1d, training mode: batch mean, biased batch variance.
    Folded affine: y = h*scale + shift, scale = g*rsqrt(var+eps),
    shift = beta - mean*scale."""
    mean = jnp.sum(h, axis=0, keepdims=True) * inv_n
    ex2 = jnp.sum(h * h, axis=0, keepdims=True) * inv_n
    var = jnp.maximum(ex2 - mean * mean, 0.0)
    scale = gamma * jax.lax.rsqrt(var + EPS)          # (1, W) row ops: cheap
    shift = beta - mean * scale
    return h * scale + shift                          # 1 mul + 1 add per element


def discrete_actor_kernel(x_ref, slab_ref, w1_ref, w2_ref, w3_ref, w4_ref,
                          out_ref, *, input_dims, batch):
    inv_n = 1.0 / float(batch)

    def row(r, width=HPAD):
        # static 2-D slice of the parameter slab (kept 2-D: (1, width))
        return slab_ref[r:r + 1, :width]

    x = x_ref[...]                                            # (B, Din) f32

    # input batch-norm
    h = _bn(x, row(ROW_G0, input_dims), row(ROW_B0, input_dims), inv_n)

    # [Linear -> BN -> ReLU] x 3 ; matmul operands bf16, accumulate f32.
    h = jnp.dot(h.astype(jnp.bfloat16), w1_ref[...],
                preferred_element_type=jnp.float32) + row(ROW_B1)
    h = jnp.maximum(_bn(h, row(ROW_G1), row(ROW_BE1), inv_n), 0.0)

    h = jnp.dot(h.astype(jnp.bfloat16), w2_ref[...],
                preferred_element_type=jnp.float32) + row(ROW_B2)
    h = jnp.maximum(_bn(h, row(ROW_G2), row(ROW_BE2), inv_n), 0.0)

    h = jnp.dot(h.astype(jnp.bfloat16), w3_ref[...],
                preferred_element_type=jnp.float32) + row(ROW_B3)
    h = jnp.maximum(_bn(h, row(ROW_G3), row(ROW_BE3), inv_n), 0.0)

    # output head: lane-dense (B, 128) logits; padded lanes have a -1e30 bias
    # so exp() underflows to exactly 0 and softmax ignores them.
    logits = jnp.dot(h.astype(jnp.bfloat16), w4_ref[...],
                     preferred_element_type=jnp.float32) + row(ROW_B4, OUTPAD)
    m = jnp.max(logits, axis=-1, keepdims=True)
    e = jnp.exp(logits - m)
    # exact reciprocal: keeps softmax rows summing to 1 within fp32 precision.
    out_ref[...] = e * pl.reciprocal(jnp.sum(e, axis=-1, keepdims=True), approx=False)


def init_params(key, input_dims, action_nums):
    """Deterministic init mimicking PyTorch defaults:
    Linear: U(-1/sqrt(fan_in), +1/sqrt(fan_in)); BatchNorm: gamma=1, beta=0."""
    dims = (input_dims,) + NEURONS + (action_nums,)
    params = {
        "g0": jnp.ones((1, input_dims), jnp.float32),
        "b0": jnp.zeros((1, input_dims), jnp.float32),
    }
    keys = jax.random.split(key, 8)
    for li in range(4):
        fan_in, fan_out = dims[li], dims[li + 1]
        bound = 1.0 / (fan_in ** 0.5)
        params[f"w{li+1}"] = jax.random.uniform(
            keys[2 * li], (fan_in, fan_out), jnp.float32, minval=-bound, maxval=bound)
        params[f"b{li+1}"] = jax.random.uniform(
            keys[2 * li + 1], (1, fan_out), jnp.float32, minval=-bound, maxval=bound)
        if li < 3:  # hidden BN layers
            params[f"g{li+1}"] = jnp.ones((1, fan_out), jnp.float32)
            params[f"be{li+1}"] = jnp.zeros((1, fan_out), jnp.float32)
    return params


def pack_params(params, input_dims, action_nums):
    """Pack small vectors into one f32 slab; pad weights to lane-aligned bf16."""
    h = NEURONS[0]
    slab = jnp.zeros((SLAB_ROWS, HPAD), jnp.float32)
    slab = slab.at[ROW_G0, :input_dims].set(params["g0"].reshape(-1))
    slab = slab.at[ROW_B0, :input_dims].set(params["b0"].reshape(-1))
    for li, (rb, rg, rbe) in zip((1, 2, 3),
                                 ((ROW_B1, ROW_G1, ROW_BE1),
                                  (ROW_B2, ROW_G2, ROW_BE2),
                                  (ROW_B3, ROW_G3, ROW_BE3))):
        slab = slab.at[rb, :h].set(params[f"b{li}"].reshape(-1))    # padded cols = 0
        slab = slab.at[rg, :h].set(params[f"g{li}"].reshape(-1))
        slab = slab.at[rbe, :h].set(params[f"be{li}"].reshape(-1))  # padded cols = 0
    # output bias row: valid lanes = bias, padded lanes [action_nums:OUTPAD] = -1e30.
    slab = slab.at[ROW_B4, :OUTPAD].set(NEG_INF)
    slab = slab.at[ROW_B4, :action_nums].set(params["b4"].reshape(-1))

    def pad_w(w, rpad, cpad):
        r, c = w.shape
        return jnp.zeros((rpad, cpad), jnp.bfloat16).at[:r, :c].set(
            w.astype(jnp.bfloat16))

    w1 = pad_w(params["w1"], input_dims, HPAD)
    w2 = pad_w(params["w2"], HPAD, HPAD)
    w3 = pad_w(params["w3"], HPAD, HPAD)
    w4 = pad_w(params["w4"], HPAD, OUTPAD)
    return slab, w1, w2, w3, w4


def discrete_actor_forward(x, packed, action_nums):
    slab, w1, w2, w3, w4 = packed
    batch, input_dims = x.shape
    kernel = functools.partial(discrete_actor_kernel,
                               input_dims=input_dims, batch=batch)
    # Everything fits comfortably in VMEM (~0.6 MB total): single grid point,
    # full-array blocks, 6 DMAs total (x, slab, 4 weight slabs).
    out_padded = pl.pallas_call(
        kernel,
        out_shape=jax.ShapeDtypeStruct((batch, OUTPAD), jnp.float32),
        in_specs=[pl.BlockSpec(memory_space=pltpu.MemorySpace.VMEM)] * 6,
        out_specs=pl.BlockSpec(memory_space=pltpu.MemorySpace.VMEM),
    )(x, slab, w1, w2, w3, w4)
    return out_padded[:, :action_nums]


def reference_forward(x, params):
    """Pure-JAX f32 reference with PyTorch training-mode BatchNorm semantics."""
    def bn(h, g, b):
        mean = jnp.mean(h, axis=0, keepdims=True)
        var = jnp.mean((h - mean) ** 2, axis=0, keepdims=True)
        return (h - mean) / jnp.sqrt(var + EPS) * g + b
    h = bn(x, params["g0"], params["b0"])
    for li in (1, 2, 3):
        h = h @ params[f"w{li}"] + params[f"b{li}"]
        h = jnp.maximum(bn(h, params[f"g{li}"], params[f"be{li}"]), 0.0)
    logits = h @ params["w4"] + params["b4"]
    return jax.nn.softmax(logits, axis=-1)


if __name__ == "__main__":
    BATCH = 8
    INPUT_DIMS = 16
    ACTION_NUMS = 4

    key = jax.random.PRNGKey(0)
    k_x, k_p = jax.random.split(key)
    x = jax.random.normal(k_x, (BATCH, INPUT_DIMS), jnp.float32)
    params = init_params(k_p, INPUT_DIMS, ACTION_NUMS)
    packed = pack_params(params, INPUT_DIMS, ACTION_NUMS)

    out = discrete_actor_forward(x, packed, ACTION_NUMS)
    out = jax.block_until_ready(out)

    # sanity: valid probabilities, rows of the softmax sum to 1
    assert out.shape == (BATCH, ACTION_NUMS)
    assert bool(jnp.all(out >= 0.0))
    assert jnp.allclose(jnp.sum(out, axis=-1), 1.0, atol=1e-5)

    # correctness vs pure-f32 reference (kernel uses bf16 matmul operands -> loose tol)
    ref = reference_forward(x, params)
    assert jnp.allclose(out, ref, atol=2e-2), float(jnp.max(jnp.abs(out - ref)))

    print("KERNEL_OK")
</pallas_src>

<mosaic_0001>
module attributes {stable_mosaic.version = 11 : i64} {
  func.func @discrete_actor_kernel(%arg0: memref<8x16xf32, #tpu.memory_space<vmem>>, %arg1: memref<16x384xf32, #tpu.memory_space<vmem>>, %arg2: memref<16x384xbf16, #tpu.memory_space<vmem>>, %arg3: memref<384x384xbf16, #tpu.memory_space<vmem>>, %arg4: memref<384x384xbf16, #tpu.memory_space<vmem>>, %arg5: memref<384x128xbf16, #tpu.memory_space<vmem>>, %arg6: memref<8x128xf32, #tpu.memory_space<vmem>>) attributes {dimension_semantics = [], scalar_prefetch = 0 : i64, scratch_operands = 0 : i64, tpu.core_type = #tpu.core_type<tc>} {
    %c0 = arith.constant 0 : index
    %c0_0 = arith.constant 0 : index
    %0 = vector.load %arg0[%c0, %c0_0] : memref<8x16xf32, #tpu.memory_space<vmem>>, vector<8x16xf32>
    %c0_1 = arith.constant 0 : index
    %c0_2 = arith.constant 0 : index
    %1 = vector.load %arg1[%c0_1, %c0_2] : memref<16x384xf32, #tpu.memory_space<vmem>>, vector<1x16xf32>
    %c1 = arith.constant 1 : index
    %c0_3 = arith.constant 0 : index
    %2 = vector.load %arg1[%c1, %c0_3] : memref<16x384xf32, #tpu.memory_space<vmem>>, vector<1x16xf32>
    %cst = arith.constant dense<0.000000e+00> : vector<16xf32>
    %3 = vector.multi_reduction <add>, %0, %cst [0] : vector<8x16xf32> to vector<16xf32>
    %4 = vector.shape_cast %3 : vector<16xf32> to vector<1x16xf32>
    %cst_4 = arith.constant 1.250000e-01 : f32
    %5 = vector.broadcast %cst_4 : f32 to vector<1x16xf32>
    %6 = arith.mulf %4, %5 : vector<1x16xf32>
    %7 = arith.mulf %0, %0 : vector<8x16xf32>
    %cst_5 = arith.constant dense<0.000000e+00> : vector<16xf32>
    %8 = vector.multi_reduction <add>, %7, %cst_5 [0] : vector<8x16xf32> to vector<16xf32>
    %9 = vector.shape_cast %8 : vector<16xf32> to vector<1x16xf32>
    %cst_6 = arith.constant 1.250000e-01 : f32
    %10 = vector.broadcast %cst_6 : f32 to vector<1x16xf32>
    %11 = arith.mulf %9, %10 : vector<1x16xf32>
    %12 = arith.mulf %6, %6 : vector<1x16xf32>
    %13 = arith.subf %11, %12 : vector<1x16xf32>
    %cst_7 = arith.constant 0.000000e+00 : f32
    %14 = vector.broadcast %cst_7 : f32 to vector<1x16xf32>
    %15 = arith.maximumf %13, %14 : vector<1x16xf32>
    %cst_8 = arith.constant 9.99999974E-6 : f32
    %16 = vector.broadcast %cst_8 : f32 to vector<1x16xf32>
    %17 = arith.addf %15, %16 : vector<1x16xf32>
    %18 = math.rsqrt %17 : vector<1x16xf32>
    %19 = arith.mulf %1, %18 : vector<1x16xf32>
    %20 = arith.mulf %6, %19 : vector<1x16xf32>
    %21 = arith.subf %2, %20 : vector<1x16xf32>
    %22 = vector.broadcast %19 : vector<1x16xf32> to vector<8x16xf32>
    %23 = arith.mulf %0, %22 : vector<8x16xf32>
    %24 = vector.broadcast %21 : vector<1x16xf32> to vector<8x16xf32>
    %25 = arith.addf %23, %24 : vector<8x16xf32>
    %26 = arith.truncf %25 : vector<8x16xf32> to vector<8x16xbf16>
    %c0_9 = arith.constant 0 : index
    %c0_10 = arith.constant 0 : index
    %27 = vector.load %arg2[%c0_9, %c0_10] : memref<16x384xbf16, #tpu.memory_space<vmem>>, vector<16x384xbf16>
    %cst_11 = arith.constant dense<0.000000e+00> : vector<8x384xf32>
    %28 = tpu.matmul %26, %27, %cst_11 {dimension_numbers = #tpu.dot_dimension_numbers<[1], [0], [0], [1], [0, 0, 1, 1], [], []>} : vector<8x16xbf16>, vector<16x384xbf16>, vector<8x384xf32> -> vector<8x384xf32>
    %c2 = arith.constant 2 : index
    %c0_12 = arith.constant 0 : index
    %29 = vector.load %arg1[%c2, %c0_12] : memref<16x384xf32, #tpu.memory_space<vmem>>, vector<1x384xf32>
    %30 = vector.broadcast %29 : vector<1x384xf32> to vector<8x384xf32>
    %31 = arith.addf %28, %30 : vector<8x384xf32>
    %c3 = arith.constant 3 : index
    %c0_13 = arith.constant 0 : index
    %32 = vector.load %arg1[%c3, %c0_13] : memref<16x384xf32, #tpu.memory_space<vmem>>, vector<1x384xf32>
    %c4 = arith.constant 4 : index
    %c0_14 = arith.constant 0 : index
    %33 = vector.load %arg1[%c4, %c0_14] : memref<16x384xf32, #tpu.memory_space<vmem>>, vector<1x384xf32>
    %cst_15 = arith.constant dense<0.000000e+00> : vector<384xf32>
    %34 = vector.multi_reduction <add>, %31, %cst_15 [0] : vector<8x384xf32> to vector<384xf32>
    %35 = vector.shape_cast %34 : vector<384xf32> to vector<1x384xf32>
    %cst_16 = arith.constant 1.250000e-01 : f32
    %36 = vector.broadcast %cst_16 : f32 to vector<1x384xf32>
    %37 = arith.mulf %35, %36 : vector<1x384xf32>
    %38 = arith.mulf %31, %31 : vector<8x384xf32>
    %cst_17 = arith.constant dense<0.000000e+00> : vector<384xf32>
    %39 = vector.multi_reduction <add>, %38, %cst_17 [0] : vector<8x384xf32> to vector<384xf32>
    %40 = vector.shape_cast %39 : vector<384xf32> to vector<1x384xf32>
    %cst_18 = arith.constant 1.250000e-01 : f32
    %41 = vector.broadcast %cst_18 : f32 to vector<1x384xf32>
    %42 = arith.mulf %40, %41 : vector<1x384xf32>
    %43 = arith.mulf %37, %37 : vector<1x384xf32>
    %44 = arith.subf %42, %43 : vector<1x384xf32>
    %cst_19 = arith.constant 0.000000e+00 : f32
    %45 = vector.broadcast %cst_19 : f32 to vector<1x384xf32>
    %46 = arith.maximumf %44, %45 : vector<1x384xf32>
    %cst_20 = arith.constant 9.99999974E-6 : f32
    %47 = vector.broadcast %cst_20 : f32 to vector<1x384xf32>
    %48 = arith.addf %46, %47 : vector<1x384xf32>
    %49 = math.rsqrt %48 : vector<1x384xf32>
    %50 = arith.mulf %32, %49 : vector<1x384xf32>
    %51 = arith.mulf %37, %50 : vector<1x384xf32>
    %52 = arith.subf %33, %51 : vector<1x384xf32>
    %53 = vector.broadcast %50 : vector<1x384xf32> to vector<8x384xf32>
    %54 = arith.mulf %31, %53 : vector<8x384xf32>
    %55 = vector.broadcast %52 : vector<1x384xf32> to vector<8x384xf32>
    %56 = arith.addf %54, %55 : vector<8x384xf32>
    %cst_21 = arith.constant 0.000000e+00 : f32
    %57 = vector.broadcast %cst_21 : f32 to vector<8x384xf32>
    %58 = arith.maximumf %56, %57 : vector<8x384xf32>
    %59 = arith.truncf %58 : vector<8x384xf32> to vector<8x384xbf16>
    %c0_22 = arith.constant 0 : index
    %c0_23 = arith.constant 0 : index
    %60 = vector.load %arg3[%c0_22, %c0_23] : memref<384x384xbf16, #tpu.memory_space<vmem>>, vector<384x384xbf16>
    %cst_24 = arith.constant dense<0.000000e+00> : vector<8x384xf32>
    %61 = tpu.matmul %59, %60, %cst_24 {dimension_numbers = #tpu.dot_dimension_numbers<[1], [0], [0], [1], [0, 0, 1, 1], [], []>} : vector<8x384xbf16>, vector<384x384xbf16>, vector<8x384xf32> -> vector<8x384xf32>
    %c5 = arith.constant 5 : index
    %c0_25 = arith.constant 0 : index
    %62 = vector.load %arg1[%c5, %c0_25] : memref<16x384xf32, #tpu.memory_space<vmem>>, vector<1x384xf32>
    %63 = vector.broadcast %62 : vector<1x384xf32> to vector<8x384xf32>
    %64 = arith.addf %61, %63 : vector<8x384xf32>
    %c6 = arith.constant 6 : index
    %c0_26 = arith.constant 0 : index
    %65 = vector.load %arg1[%c6, %c0_26] : memref<16x384xf32, #tpu.memory_space<vmem>>, vector<1x384xf32>
    %c7 = arith.constant 7 : index
    %c0_27 = arith.constant 0 : index
    %66 = vector.load %arg1[%c7, %c0_27] : memref<16x384xf32, #tpu.memory_space<vmem>>, vector<1x384xf32>
    %cst_28 = arith.constant dense<0.000000e+00> : vector<384xf32>
    %67 = vector.multi_reduction <add>, %64, %cst_28 [0] : vector<8x384xf32> to vector<384xf32>
    %68 = vector.shape_cast %67 : vector<384xf32> to vector<1x384xf32>
    %cst_29 = arith.constant 1.250000e-01 : f32
    %69 = vector.broadcast %cst_29 : f32 to vector<1x384xf32>
    %70 = arith.mulf %68, %69 : vector<1x384xf32>
    %71 = arith.mulf %64, %64 : vector<8x384xf32>
    %cst_30 = arith.constant dense<0.000000e+00> : vector<384xf32>
    %72 = vector.multi_reduction <add>, %71, %cst_30 [0] : vector<8x384xf32> to vector<384xf32>
    %73 = vector.shape_cast %72 : vector<384xf32> to vector<1x384xf32>
    %cst_31 = arith.constant 1.250000e-01 : f32
    %74 = vector.broadcast %cst_31 : f32 to vector<1x384xf32>
    %75 = arith.mulf %73, %74 : vector<1x384xf32>
    %76 = arith.mulf %70, %70 : vector<1x384xf32>
    %77 = arith.subf %75, %76 : vector<1x384xf32>
    %cst_32 = arith.constant 0.000000e+00 : f32
    %78 = vector.broadcast %cst_32 : f32 to vector<1x384xf32>
    %79 = arith.maximumf %77, %78 : vector<1x384xf32>
    %cst_33 = arith.constant 9.99999974E-6 : f32
    %80 = vector.broadcast %cst_33 : f32 to vector<1x384xf32>
    %81 = arith.addf %79, %80 : vector<1x384xf32>
    %82 = math.rsqrt %81 : vector<1x384xf32>
    %83 = arith.mulf %65, %82 : vector<1x384xf32>
    %84 = arith.mulf %70, %83 : vector<1x384xf32>
    %85 = arith.subf %66, %84 : vector<1x384xf32>
    %86 = vector.broadcast %83 : vector<1x384xf32> to vector<8x384xf32>
    %87 = arith.mulf %64, %86 : vector<8x384xf32>
    %88 = vector.broadcast %85 : vector<1x384xf32> to vector<8x384xf32>
    %89 = arith.addf %87, %88 : vector<8x384xf32>
    %cst_34 = arith.constant 0.000000e+00 : f32
    %90 = vector.broadcast %cst_34 : f32 to vector<8x384xf32>
    %91 = arith.maximumf %89, %90 : vector<8x384xf32>
    %92 = arith.truncf %91 : vector<8x384xf32> to vector<8x384xbf16>
    %c0_35 = arith.constant 0 : index
    %c0_36 = arith.constant 0 : index
    %93 = vector.load %arg4[%c0_35, %c0_36] : memref<384x384xbf16, #tpu.memory_space<vmem>>, vector<384x384xbf16>
    %cst_37 = arith.constant dense<0.000000e+00> : vector<8x384xf32>
    %94 = tpu.matmul %92, %93, %cst_37 {dimension_numbers = #tpu.dot_dimension_numbers<[1], [0], [0], [1], [0, 0, 1, 1], [], []>} : vector<8x384xbf16>, vector<384x384xbf16>, vector<8x384xf32> -> vector<8x384xf32>
    %c8 = arith.constant 8 : index
    %c0_38 = arith.constant 0 : index
    %95 = vector.load %arg1[%c8, %c0_38] : memref<16x384xf32, #tpu.memory_space<vmem>>, vector<1x384xf32>
    %96 = vector.broadcast %95 : vector<1x384xf32> to vector<8x384xf32>
    %97 = arith.addf %94, %96 : vector<8x384xf32>
    %c9 = arith.constant 9 : index
    %c0_39 = arith.constant 0 : index
    %98 = vector.load %arg1[%c9, %c0_39] : memref<16x384xf32, #tpu.memory_space<vmem>>, vector<1x384xf32>
    %c10 = arith.constant 10 : index
    %c0_40 = arith.constant 0 : index
    %99 = vector.load %arg1[%c10, %c0_40] : memref<16x384xf32, #tpu.memory_space<vmem>>, vector<1x384xf32>
    %cst_41 = arith.constant dense<0.000000e+00> : vector<384xf32>
    %100 = vector.multi_reduction <add>, %97, %cst_41 [0] : vector<8x384xf32> to vector<384xf32>
    %101 = vector.shape_cast %100 : vector<384xf32> to vector<1x384xf32>
    %cst_42 = arith.constant 1.250000e-01 : f32
    %102 = vector.broadcast %cst_42 : f32 to vector<1x384xf32>
    %103 = arith.mulf %101, %102 : vector<1x384xf32>
    %104 = arith.mulf %97, %97 : vector<8x384xf32>
    %cst_43 = arith.constant dense<0.000000e+00> : vector<384xf32>
    %105 = vector.multi_reduction <add>, %104, %cst_43 [0] : vector<8x384xf32> to vector<384xf32>
    %106 = vector.shape_cast %105 : vector<384xf32> to vector<1x384xf32>
    %cst_44 = arith.constant 1.250000e-01 : f32
    %107 = vector.broadcast %cst_44 : f32 to vector<1x384xf32>
    %108 = arith.mulf %106, %107 : vector<1x384xf32>
    %109 = arith.mulf %103, %103 : vector<1x384xf32>
    %110 = arith.subf %108, %109 : vector<1x384xf32>
    %cst_45 = arith.constant 0.000000e+00 : f32
    %111 = vector.broadcast %cst_45 : f32 to vector<1x384xf32>
    %112 = arith.maximumf %110, %111 : vector<1x384xf32>
    %cst_46 = arith.constant 9.99999974E-6 : f32
    %113 = vector.broadcast %cst_46 : f32 to vector<1x384xf32>
    %114 = arith.addf %112, %113 : vector<1x384xf32>
    %115 = math.rsqrt %114 : vector<1x384xf32>
    %116 = arith.mulf %98, %115 : vector<1x384xf32>
    %117 = arith.mulf %103, %116 : vector<1x384xf32>
    %118 = arith.subf %99, %117 : vector<1x384xf32>
    %119 = vector.broadcast %116 : vector<1x384xf32> to vector<8x384xf32>
    %120 = arith.mulf %97, %119 : vector<8x384xf32>
    %121 = vector.broadcast %118 : vector<1x384xf32> to vector<8x384xf32>
    %122 = arith.addf %120, %121 : vector<8x384xf32>
    %cst_47 = arith.constant 0.000000e+00 : f32
    %123 = vector.broadcast %cst_47 : f32 to vector<8x384xf32>
    %124 = arith.maximumf %122, %123 : vector<8x384xf32>
    %125 = arith.truncf %124 : vector<8x384xf32> to vector<8x384xbf16>
    %c0_48 = arith.constant 0 : index
    %c0_49 = arith.constant 0 : index
    %126 = vector.load %arg5[%c0_48, %c0_49] : memref<384x128xbf16, #tpu.memory_space<vmem>>, vector<384x128xbf16>
    %cst_50 = arith.constant dense<0.000000e+00> : vector<8x128xf32>
    %127 = tpu.matmul %125, %126, %cst_50 {dimension_numbers = #tpu.dot_dimension_numbers<[1], [0], [0], [1], [0, 0, 1, 1], [], []>} : vector<8x384xbf16>, vector<384x128xbf16>, vector<8x128xf32> -> vector<8x128xf32>
    %c11 = arith.constant 11 : index
    %c0_51 = arith.constant 0 : index
    %128 = vector.load %arg1[%c11, %c0_51] : memref<16x384xf32, #tpu.memory_space<vmem>>, vector<1x128xf32>
    %129 = vector.broadcast %128 : vector<1x128xf32> to vector<8x128xf32>
    %130 = arith.addf %127, %129 : vector<8x128xf32>
    %cst_52 = arith.constant dense<0xFF800000> : vector<8xf32>
    %131 = vector.multi_reduction <maximumf>, %130, %cst_52 [1] : vector<8x128xf32> to vector<8xf32>
    %132 = vector.shape_cast %131 : vector<8xf32> to vector<8x1xf32>
    %133 = vector.broadcast %132 : vector<8x1xf32> to vector<8x128xf32>
    %134 = arith.subf %130, %133 : vector<8x128xf32>
    %135 = math.exp %134 : vector<8x128xf32>
    %cst_53 = arith.constant dense<0.000000e+00> : vector<8xf32>
    %136 = vector.multi_reduction <add>, %135, %cst_53 [1] : vector<8x128xf32> to vector<8xf32>
    %137 = vector.shape_cast %136 : vector<8xf32> to vector<8x1xf32>
    %138 = tpu.reciprocal %137 : vector<8x1xf32> -> vector<8x1xf32>
    %139 = vector.broadcast %138 : vector<8x1xf32> to vector<8x128xf32>
    %140 = arith.mulf %135, %139 : vector<8x128xf32>
    %c0_54 = arith.constant 0 : index
    %c0_55 = arith.constant 0 : index
    %141 = vector.load %arg6[%c0_54, %c0_55] : memref<8x128xf32, #tpu.memory_space<vmem>>, vector<8x128xf32>
    tpu.vector_store %arg6[%c0_54, %c0_55], %140 {strides = array<i32>} : memref<8x128xf32, #tpu.memory_space<vmem>>, vector<8x128xf32>,
    return
  }
}

</mosaic_0001>

<llo_original>
// kernel: tpu_custom_call.1
$region0: #{tpu_custom_call.1}
  #allocation0 [shape = 'u32[]', space=smem, size = 0x4, offset = 0x4, fixed_abs, tag = 'smem constant byte address 0x4 - core index']
  #allocation1 [shape = 'u32[144,128]{1,0:T(1,128)}', space=vmem, size = 0x12000, scoped, tag = 'internal scratch']
  %s0 = inlined_call_operand.hbm [shape: f32[8,16], index: 0, kind: input, shape index: {}]
  %s1 = inlined_call_operand.hbm [shape: f32[16,384], index: 1, kind: input, shape index: {}]
  %s2 = inlined_call_operand.hbm [shape: bf16[16,384], index: 2, kind: input, shape index: {}]
  %s3 = inlined_call_operand.hbm [shape: bf16[384,384], index: 3, kind: input, shape index: {}]
  %s4 = inlined_call_operand.hbm [shape: bf16[384,384], index: 4, kind: input, shape index: {}]
  %s5 = inlined_call_operand.hbm [shape: bf16[384,128], index: 5, kind: input, shape index: {}]
  %s6 = inlined_call_operand.hbm [shape: f32[8,128], index: 6, kind: output, shape index: {}]
  %s7 = sld [smem:[#allocation0]]
  $region58: #{tpu_custom_call.1} parent=0
    _
  %s9 = ssub.s32 1, %s7
  %s10 = scalar_select 0, %s9, %s7
  $region1: #{tpu_custom_call.1} parent=0
    #allocation2 [shape = 'u8[4096]{0}', space=vmem, size = 0x1000, scoped, tag = 'input window, operand 0, single buffered']
    #allocation3 [shape = 's32[1]{0}', space=sflag, size = 0x4, scoped, tag = 'scoped memory for tpu_custom_call.1']
    #allocation4 [shape = 's32[1]{0}', space=sflag, size = 0x4, scoped, tag = 'scoped memory for tpu_custom_call.1']
    #allocation5 [shape = 'u8[24576]{0}', space=vmem, size = 0x6000, scoped, tag = 'input window, operand 1, single buffered']
    #allocation6 [shape = 's32[1]{0}', space=sflag, size = 0x4, scoped, tag = 'scoped memory for tpu_custom_call.1']
    #allocation7 [shape = 'u8[12288]{0}', space=vmem, size = 0x3000, scoped, tag = 'input window, operand 2, single buffered']
    #allocation8 [shape = 'u8[294912]{0}', space=vmem, size = 0x48000, scoped, tag = 'input window, operand 3, single buffered']
    #allocation9 [shape = 's32[1]{0}', space=sflag, size = 0x4, scoped, tag = 'scoped memory for tpu_custom_call.1']
    #allocation10 [shape = 'u8[294912]{0}', space=vmem, size = 0x48000, scoped, tag = 'input window, operand 4, single buffered']
    #allocation11 [shape = 'u8[98304]{0}', space=vmem, size = 0x18000, scoped, tag = 'input window, operand 5, single buffered']
    #allocation12 [shape = 's32[1]{0}', space=sflag, size = 0x4, scoped, tag = 'scoped memory for tpu_custom_call.1']
    #allocation13 [shape = 'u8[4096]{0}', space=vmem, size = 0x1000, scoped, tag = 'output window, operand 0, single buffered']
    %11 = vsyncpa [#allocation3], 0
    %12 = vsyncpa [#allocation6], 0
    %13 = vsyncpa [#allocation9], 0
    %14 = vsyncpa [#allocation12], 0
    %15 = vsyncpa [#allocation4], 0
    // Predicated region
    $region2: #{tpu_custom_call.1} parent=1 // pred_check
      _
    $region3: #{tpu_custom_call.1} parent=1 // pred_check_branch
      %17 = sbr.rel (0) target = $region5
    $region4: #{tpu_custom_call.1} parent=1 // pred_region
      %s19 = ssub.s32 128, 128
      %20 = vsyncadd [#allocation3], %s19
      %s22 = sshll.u32 [#allocation2], 4
      %s23 = int_to_ptr.vmem [resolvable:$true] %s22
      %25 = dma.hbm_to_vmem [thread:$0]  %s0, 128, %s23, [#allocation3]
    $region5: #{tpu_custom_call.1} parent=1 // pred_fallthru
      _
    // Predicated region
    $region6: #{tpu_custom_call.1} parent=1 // pred_check
      _
    $region7: #{tpu_custom_call.1} parent=1 // pred_check_branch
      %27 = sbr.rel (0) target = $region9
    $region8: #{tpu_custom_call.1} parent=1 // pred_region
      %s29 = ssub.s32 768, 768
      %30 = vsyncadd [#allocation6], %s29
      %s31 = sshll.u32 [#allocation5], 4
      %s32 = int_to_ptr.vmem [resolvable:$true] %s31
      %37 = dma.hbm_to_vmem [thread:$0]  %s1, 768, %s32, [#allocation6], 384, 384, 24
    $region9: #{tpu_custom_call.1} parent=1 // pred_fallthru
      _
    // Predicated region
    $region10: #{tpu_custom_call.1} parent=1 // pred_check
      _
    $region11: #{tpu_custom_call.1} parent=1 // pred_check_branch
      %39 = sbr.rel (0) target = $region13
    $region12: #{tpu_custom_call.1} parent=1 // pred_region
      %s41 = ssub.s32 384, 384
      %42 = vsyncadd [#allocation6], %s41
      %s43 = sshll.u32 [#allocation7], 4
      %s44 = int_to_ptr.vmem [resolvable:$true] %s43
      %49 = dma.hbm_to_vmem [thread:$0]  %s2, 384, %s44, [#allocation6], 192, 192, 12
    $region13: #{tpu_custom_call.1} parent=1 // pred_fallthru
      _
    // Predicated region
    $region14: #{tpu_custom_call.1} parent=1 // pred_check
      _
    $region15: #{tpu_custom_call.1} parent=1 // pred_check_branch
      %51 = sbr.rel (0) target = $region17
    $region16: #{tpu_custom_call.1} parent=1 // pred_region
      %s53 = ssub.s32 9216, 9216
      %54 = vsyncadd [#allocation9], %s53
      %s55 = sshll.u32 [#allocation8], 4
      %s56 = int_to_ptr.vmem [resolvable:$true] %s55
      %61 = dma.hbm_to_vmem [thread:$0]  %s3, 9216, %s56, [#allocation9], 192, 192, 12
    $region17: #{tpu_custom_call.1} parent=1 // pred_fallthru
      _
    // Predicated region
    $region18: #{tpu_custom_call.1} parent=1 // pred_check
      _
    $region19: #{tpu_custom_call.1} parent=1 // pred_check_branch
      %63 = sbr.rel (0) target = $region21
    $region20: #{tpu_custom_call.1} parent=1 // pred_region
      %s65 = ssub.s32 9216, 9216
      %66 = vsyncadd [#allocation9], %s65
      %s67 = sshll.u32 [#allocation10], 4
      %s68 = int_to_ptr.vmem [resolvable:$true] %s67
      %73 = dma.hbm_to_vmem [thread:$0]  %s4, 9216, %s68, [#allocation9], 192, 192, 12
    $region21: #{tpu_custom_call.1} parent=1 // pred_fallthru
      _
    // Predicated region
    $region22: #{tpu_custom_call.1} parent=1 // pred_check
      _
    $region23: #{tpu_custom_call.1} parent=1 // pred_check_branch
      %75 = sbr.rel (0) target = $region25
    $region24: #{tpu_custom_call.1} parent=1 // pred_region
      %s77 = ssub.s32 3072, 3072
      %78 = vsyncadd [#allocation12], %s77
      %s79 = sshll.u32 [#allocation11], 4
      %s80 = int_to_ptr.vmem [resolvable:$true] %s79
      %85 = dma.hbm_to_vmem [thread:$0]  %s5, 3072, %s80, [#allocation12], 64, 64, 4
    $region25: #{tpu_custom_call.1} parent=1 // pred_fallthru
      _
    // Predicated region
    $region26: #{tpu_custom_call.1} parent=1 // pred_check
      _
    $region27: #{tpu_custom_call.1} parent=1 // pred_check_branch
      %87 = sbr.rel (0) target = $region29
    $region28: #{tpu_custom_call.1} parent=1 // pred_region
      %88 = dma.done [#allocation3], 128
    $region29: #{tpu_custom_call.1} parent=1 // pred_fallthru
      _
    // Predicated region
    $region30: #{tpu_custom_call.1} parent=1 // pred_check
      _
    $region31: #{tpu_custom_call.1} parent=1 // pred_check_branch
      %90 = sbr.rel (0) target = $region33
    $region32: #{tpu_custom_call.1} parent=1 // pred_region
      %91 = dma.done [#allocation6], 768
    $region33: #{tpu_custom_call.1} parent=1 // pred_fallthru
      _
    // Predicated region
    $region34: #{tpu_custom_call.1} parent=1 // pred_check
      _
    $region35: #{tpu_custom_call.1} parent=1 // pred_check_branch
      %93 = sbr.rel (0) target = $region37
    $region36: #{tpu_custom_call.1} parent=1 // pred_region
      %94 = dma.done [#allocation6], 384
    $region37: #{tpu_custom_call.1} parent=1 // pred_fallthru
      _
    // Predicated region
    $region38: #{tpu_custom_call.1} parent=1 // pred_check
      _
    $region39: #{tpu_custom_call.1} parent=1 // pred_check_branch
      %96 = sbr.rel (0) target = $region41
    $region40: #{tpu_custom_call.1} parent=1 // pred_region
      %97 = dma.done [#allocation9], 9216
    $region41: #{tpu_custom_call.1} parent=1 // pred_fallthru
      _
    // Predicated region
    $region42: #{tpu_custom_call.1} parent=1 // pred_check
      _
    $region43: #{tpu_custom_call.1} parent=1 // pred_check_branch
      %99 = sbr.rel (0) target = $region45
    $region44: #{tpu_custom_call.1} parent=1 // pred_region
      %100 = dma.done [#allocation9], 9216
    $region45: #{tpu_custom_call.1} parent=1 // pred_fallthru
      _
    // Predicated region
    $region46: #{tpu_custom_call.1} parent=1 // pred_check
      _
    $region47: #{tpu_custom_call.1} parent=1 // pred_check_branch
      %102 = sbr.rel (0) target = $region49
    $region48: #{tpu_custom_call.1} parent=1 // pred_region
      %103 = dma.done [#allocation12], 3072
    $region49: #{tpu_custom_call.1} parent=1 // pred_fallthru
      _
    %v105 = vld [vmem:[#allocation2] sm:$0xff]
    %v106 = vld [vmem:[#allocation5] ss:$0 sm:$0xff]
    %v107 = vld [vmem:[#allocation5 + $0x1] ss:$0 sm:$0xff]
    %vm108 = vcmask 130048
    %v109 = vsel %vm108, %v105, 0.0
    %v110 = vrot.slane %v109, 4
    %v111 = vadd.f32 %v109, %v110
    %v112 = vrot.slane %v111, 2
    %v113 = vadd.f32 %v111, %v112
    %v114 = vrot.slane %v113, 1
    %v115 = vadd.f32 %v113, %v114
    %v116 = vmul.f32 %v115, 0.125
    %v117 = vmul.f32 %v105, %v105
    %v118 = vsel %vm108, %v117, 0.0
    %v119 = vrot.slane %v118, 4
    %v120 = vadd.f32 %v118, %v119
    %v121 = vrot.slane %v120, 2
    %v122 = vadd.f32 %v120, %v121
    %v123 = vrot.slane %v122, 1
    %v124 = vadd.f32 %v122, %v123
    %v125 = vmul.f32 %v124, 0.125
    %v126 = vmul.f32 %v116, %v116
    %v127 = vsub.f32 %v125, %v126
    %v128 = vmax.f32 %v127, 0.0
    %v129 = vadd.f32 %v128, 1e-05
    %v130 = vrsqrt.pop %v129
    %v131 = vmul.f32 %v106, %v130
    %v132 = vmul.f32 %v116, %v131
    %v133 = vsub.f32 %v107, %v132
    %v134 = vmul.f32 %v105, %v131
    %v135 = vadd.f32 %v134, %v133
    %v136 = vpack.c.bf16 %v135, %v135
    %v137 = vld [vmem:[#allocation7] sm:$0xff]
    %v138 = vld [vmem:[#allocation7 + $0x8] sm:$0xf]
    %v139 = vld [vmem:[#allocation7 + $0xc] sm:$0xff]
    %v140 = vld [vmem:[#allocation7 + $0x14] sm:$0xf]
    %s141 = scalar_lea.vmem [#allocation5], 2
    %v142 = vld [vmem:[%s141] ss:$8 sm:$0x7]
    %v144 = vlaneseq
    %v145 = vshrl.u32 %v144, 7
    %v146 = vsub.s32 0, %v145
    %v147 = vrot.slane %v142, %v146
    %v148 = vlaneseq
    %v149 = vshrl.u32 %v148, 7
    %v150 = vsub.s32 1, %v149
    %v151 = vrot.slane %v142, %v150
    %v152 = vlaneseq
    %v153 = vshrl.u32 %v152, 7
    %v154 = vsub.s32 2, %v153
    %v155 = vrot.slane %v142, %v154
    %v163 = vunpack.c.l.b16 %v137
    %v164 = vunpack.c.h.b16 %v137
    %v165 = vunpack.c.l.b16 %v138
    %v166 = vunpack.c.l.b16 %v139
    %v167 = vunpack.c.h.b16 %v139
    %v168 = vunpack.c.l.b16 %v140
    %v169 = vpack.c.b16 %v166, %v163
    %v170 = vpack.c.b16 %v167, %v164
    %v171 = vpack.c.b16 %v168, %v165
    %v176 = vsel %vm108, %v136, 0
    %178 = vmatprep.subr.bf16.mxu0 %v170
    %179 = vmatpush1.bf16.msra.mxu0 %v169
    %180 = vmatprep.subr.bf16.mxu0 0
    %181 = vmatpush1.bf16.msra.mxu0 0
    %182 = vmatprep.subr.bf16.mxu0 0
    %183 = vmatpush1.bf16.msra.mxu0 0
    %184 = vmatprep.subr.bf16.mxu0 0
    %185 = vmatpush1.bf16.msra.mxu0 0
    %186 = vmatprep.subr.bf16.mxu0 0
    %187 = vmatpush1.bf16.msra.mxu0 0
    %188 = vmatprep.subr.bf16.mxu0 0
    %189 = vmatpush1.bf16.msra.mxu0 0
    %190 = vmatprep.subr.bf16.mxu0 0
    %191 = vmatpush1.bf16.msra.mxu0 0
    %192 = vmatprep.subr.bf16.mxu0 0
    %193 = vmatpush1.bf16.msra.mxu0 0
    %194 = vmatprep.subr.bf16.mxu0 0
    %195 = vmatpush1.bf16.msra.mxu0 0
    %196 = vmatprep.subr.bf16.mxu0 0
    %197 = vmatpush1.bf16.msra.mxu0 0
    %198 = vmatprep.subr.bf16.mxu0 0
    %199 = vmatpush1.bf16.msra.mxu0 0
    %200 = vmatprep.subr.bf16.mxu0 0
    %201 = vmatpush1.bf16.msra.mxu0 0
    %202 = vmatprep.subr.bf16.mxu0 0
    %203 = vmatpush1.bf16.msra.mxu0 0
    %204 = vmatprep.subr.bf16.mxu0 0
    %205 = vmatpush1.bf16.msra.mxu0 0
    %206 = vmatprep.subr.bf16.mxu0 0
    %207 = vmatpush1.bf16.msra.mxu0 0
    %208 = vmatprep.subr.bf16.mxu0 0
    %209 = vmatpush1.bf16.msra.mxu0 0
    %210 = vmatprep.mubr.bf16.mxu0 0
    %211 = vmatmul.mubr.bf16.gmra.mrb[0].mxu0 %v176
    %v212 = vpop.f32.mrb[0].mxu0
    %v213 = vadd.f32 %v147, %v212
    %v214 = vpop.f32.mrb[0].mxu0
    %v215 = vadd.f32 %v151, %v214
    %v216 = vpop.f32.mrb[0].mxu0
    %v217 = vpop.f32.mrb[0].mxu0
    %218 = vdwg.mxu0
    %219 = vmatprep.subr.bf16.mxu0 0
    %220 = vmatpush1.bf16.msra.mxu0 %v171
    %221 = vmatprep.subr.bf16.mxu0 0
    %222 = vmatpush1.bf16.msra.mxu0 0
    %223 = vmatprep.subr.bf16.mxu0 0
    %224 = vmatpush1.bf16.msra.mxu0 0
    %225 = vmatprep.subr.bf16.mxu0 0
    %226 = vmatpush1.bf16.msra.mxu0 0
    %227 = vmatprep.subr.bf16.mxu0 0
    %228 = vmatpush1.bf16.msra.mxu0 0
    %229 = vmatprep.subr.bf16.mxu0 0
    %230 = vmatpush1.bf16.msra.mxu0 0
    %231 = vmatprep.subr.bf16.mxu0 0
    %232 = vmatpush1.bf16.msra.mxu0 0
    %233 = vmatprep.subr.bf16.mxu0 0
    %234 = vmatpush1.bf16.msra.mxu0 0
    %235 = vmatprep.subr.bf16.mxu0 0
    %236 = vmatpush1.bf16.msra.mxu0 0
    %237 = vmatprep.subr.bf16.mxu0 0
    %238 = vmatpush1.bf16.msra.mxu0 0
    %239 = vmatprep.subr.bf16.mxu0 0
    %240 = vmatpush1.bf16.msra.mxu0 0
    %241 = vmatprep.subr.bf16.mxu0 0
    %242 = vmatpush1.bf16.msra.mxu0 0
    %243 = vmatprep.subr.bf16.mxu0 0
    %244 = vmatpush1.bf16.msra.mxu0 0
    %245 = vmatprep.subr.bf16.mxu0 0
    %246 = vmatpush1.bf16.msra.mxu0 0
    %247 = vmatprep.subr.bf16.mxu0 0
    %248 = vmatpush1.bf16.msra.mxu0 0
    %249 = vmatprep.subr.bf16.mxu0 0
    %250 = vmatpush1.bf16.msra.mxu0 0
    %251 = vmatprep.mubr.bf16.mxu0 0
    %252 = vmatmul.mubr.bf16.gmra.mrb[0].mxu0 %v176
    %v253 = vpop.f32.mrb[0].mxu0
    %v254 = vadd.f32 %v155, %v253
    %v255 = vpop.f32.mrb[0].mxu0
    %v256 = vpop.f32.mrb[0].mxu0
    %v257 = vpop.f32.mrb[0].mxu0
    %258 = vdwg.mxu0
    %s259 = scalar_lea.vmem [#allocation5], 3
    %v260 = vld [vmem:[%s259] ss:$8 sm:$0x7]
    %s261 = scalar_lea.vmem [#allocation5], 4
    %v262 = vld [vmem:[%s261] ss:$8 sm:$0x7]
    %v263 = vrot.slane %v213, 4
    %v264 = vadd.f32 %v213, %v263
    %v265 = vrot.slane %v264, 2
    %v266 = vadd.f32 %v264, %v265
    %v267 = vrot.slane %v266, 1
    %v268 = vadd.f32 %v266, %v267
    %v269 = vrot.slane %v215, 4
    %v270 = vadd.f32 %v215, %v269
    %v271 = vrot.slane %v270, 2
    %v272 = vadd.f32 %v270, %v271
    %v273 = vrot.slane %v272, 1
    %v274 = vadd.f32 %v272, %v273
    %v275 = vrot.slane %v254, 4
    %v276 = vadd.f32 %v254, %v275
    %v277 = vrot.slane %v276, 2
    %v278 = vadd.f32 %v276, %v277
    %v279 = vrot.slane %v278, 1
    %v280 = vadd.f32 %v278, %v279
    %v281 = vmul.f32 %v268, 0.125
    %v282 = vmul.f32 %v274, 0.125
    %v283 = vmul.f32 %v280, 0.125
    %v284 = vmul.f32 %v213, %v213
    %v285 = vmul.f32 %v215, %v215
    %v286 = vmul.f32 %v254, %v254
    %v287 = vrot.slane %v284, 4
    %v288 = vadd.f32 %v284, %v287
    %v289 = vrot.slane %v288, 2
    %v290 = vadd.f32 %v288, %v289
    %v291 = vrot.slane %v290, 1
    %v292 = vadd.f32 %v290, %v291
    %v293 = vrot.slane %v285, 4
    %v294 = vadd.f32 %v285, %v293
    %v295 = vrot.slane %v294, 2
    %v296 = vadd.f32 %v294, %v295
    %v297 = vrot.slane %v296, 1
    %v298 = vadd.f32 %v296, %v297
    %v299 = vrot.slane %v286, 4
    %v300 = vadd.f32 %v286, %v299
    %v301 = vrot.slane %v300, 2
    %v302 = vadd.f32 %v300, %v301
    %v303 = vrot.slane %v302, 1
    %v304 = vadd.f32 %v302, %v303
    %v305 = vmul.f32 %v292, 0.125
    %v306 = vmul.f32 %v298, 0.125
    %v307 = vmul.f32 %v304, 0.125
    %v308 = vmul.f32 %v281, %v281
    %v309 = vmul.f32 %v282, %v282
    %v310 = vmul.f32 %v283, %v283
    %v311 = vsub.f32 %v305, %v308
    %v312 = vsub.f32 %v306, %v309
    %v313 = vsub.f32 %v307, %v310
    %v314 = vmax.f32 %v311, 0.0
    %v315 = vmax.f32 %v312, 0.0
    %v316 = vmax.f32 %v313, 0.0
    %v317 = vadd.f32 %v314, 1e-05
    %v318 = vadd.f32 %v315, 1e-05
    %v319 = vadd.f32 %v316, 1e-05
    %v320 = vrsqrt.pop %v317
    %v321 = vrsqrt.pop %v318
    %v322 = vrsqrt.pop %v319
    %v326 = vcombine.low %v320, %v321
    %v328 = vunpack.c.l.s4 1966171168
    %v329 = vunpack.c.0.s8 %v328
    %v330 = vlaneseq
    %v331 = vshrl.u32 %v330, 7
    %v332 = vsub.s32 %v329, %v331
    %v333 = vrot.slane %v326, %v332
    %v335 = vunpack.c.l.s4 1966171168
    %v336 = vunpack.c.0.s8 %v335
    %v337 = vlaneseq
    %v338 = vshrl.u32 %v337, 7
    %v339 = vsub.s32 %v336, %v338
    %v340 = vrot.slane %v322, %v339
    %v341 = vcombine.low %v333, %v340
    %v343 = vunpack.c.l.s4 1966171168
    %v344 = vunpack.c.0.s8 %v343
    %v345 = vlaneseq
    %v346 = vshrl.u32 %v345, 7
    %v347 = vsub.s32 %v344, %v346
    %v348 = vrot.slane %v341, %v347
    %v350 = vmul.f32 %v260, %v348
    %v352 = vlaneseq
    %v353 = vshrl.u32 %v352, 7
    %v354 = vsub.s32 0, %v353
    %v355 = vrot.slane %v350, %v354
    %v356 = vlaneseq
    %v357 = vshrl.u32 %v356, 7
    %v358 = vsub.s32 1, %v357
    %v359 = vrot.slane %v350, %v358
    %v360 = vlaneseq
    %v361 = vshrl.u32 %v360, 7
    %v362 = vsub.s32 2, %v361
    %v363 = vrot.slane %v350, %v362
    %v367 = vmul.f32 %v281, %v355
    %v368 = vmul.f32 %v282, %v359
    %v369 = vmul.f32 %v283, %v363
    %v373 = vcombine.low %v367, %v368
    %v375 = vunpack.c.l.s4 1966171168
    %v376 = vunpack.c.0.s8 %v375
    %v377 = vlaneseq
    %v378 = vshrl.u32 %v377, 7
    %v379 = vsub.s32 %v376, %v378
    %v380 = vrot.slane %v373, %v379
    %v382 = vunpack.c.l.s4 1966171168
    %v383 = vunpack.c.0.s8 %v382
    %v384 = vlaneseq
    %v385 = vshrl.u32 %v384, 7
    %v386 = vsub.s32 %v383, %v385
    %v387 = vrot.slane %v369, %v386
    %v388 = vcombine.low %v380, %v387
    %v390 = vunpack.c.l.s4 1966171168
    %v391 = vunpack.c.0.s8 %v390
    %v392 = vlaneseq
    %v393 = vshrl.u32 %v392, 7
    %v394 = vsub.s32 %v391, %v393
    %v395 = vrot.slane %v388, %v394
    %v397 = vsub.f32 %v262, %v395
    %v398 = vmul.f32 %v213, %v355
    %v399 = vmul.f32 %v215, %v359
    %v400 = vmul.f32 %v254, %v363
    %v402 = vlaneseq
    %v403 = vshrl.u32 %v402, 7
    %v404 = vsub.s32 0, %v403
    %v405 = vrot.slane %v397, %v404
    %v406 = vlaneseq
    %v407 = vshrl.u32 %v406, 7
    %v408 = vsub.s32 1, %v407
    %v409 = vrot.slane %v397, %v408
    %v410 = vlaneseq
    %v411 = vshrl.u32 %v410, 7
    %v412 = vsub.s32 2, %v411
    %v413 = vrot.slane %v397, %v412
    %v417 = vadd.f32 %v398, %v405
    %v418 = vadd.f32 %v399, %v409
    %v419 = vadd.f32 %v400, %v413
    %v420 = vmax.f32 %v417, 0.0
    %v421 = vmax.f32 %v418, 0.0
    %v422 = vmax.f32 %v419, 0.0
    %v423 = vpack.c.bf16 %v420, %v420
    %v424 = vpack.c.bf16 %v421, %v421
    %v425 = vpack.c.bf16 %v422, %v422
    %v426 = vld [vmem:[#allocation8] sm:$0xff]
    %v427 = vld [vmem:[#allocation8 + $0x8] sm:$0xf]
    %v428 = vld [vmem:[#allocation8 + $0xc] sm:$0xff]
    %v429 = vld [vmem:[#allocation8 + $0x14] sm:$0xf]
    %v430 = vld [vmem:[#allocation8 + $0x18] sm:$0xff]
    %v431 = vld [vmem:[#allocation8 + $0x20] sm:$0xf]
    %v432 = vld [vmem:[#allocation8 + $0x24] sm:$0xff]
    %v433 = vld [vmem:[#allocation8 + $0x2c] sm:$0xf]
    %v434 = vld [vmem:[#allocation8 + $0x30] sm:$0xff]
    %v435 = vld [vmem:[#allocation8 + $0x38] sm:$0xf]
    %v436 = vld [vmem:[#allocation8 + $0x3c] sm:$0xff]
    %v437 = vld [vmem:[#allocation8 + $0x44] sm:$0xf]
    %v438 = vld [vmem:[#allocation8 + $0x48] sm:$0xff]
    %v439 = vld [vmem:[#allocation8 + $0x50] sm:$0xf]
    %v440 = vld [vmem:[#allocation8 + $0x54] sm:$0xff]
    %v441 = vld [vmem:[#allocation8 + $0x5c] sm:$0xf]
    %v442 = vld [vmem:[#allocation8 + $0x60] sm:$0xff]
    %v443 = vld [vmem:[#allocation8 + $0x68] sm:$0xf]
    %v444 = vld [vmem:[#allocation8 + $0x6c] sm:$0xff]
    %v445 = vld [vmem:[#allocation8 + $0x74] sm:$0xf]
    %v446 = vld [vmem:[#allocation8 + $0x78] sm:$0xff]
    %v447 = vld [vmem:[#allocation8 + $0x80] sm:$0xf]
    %v448 = vld [vmem:[#allocation8 + $0x84] sm:$0xff]
    %v449 = vld [vmem:[#allocation8 + $0x8c] sm:$0xf]
    %v450 = vld [vmem:[#allocation8 + $0x90] sm:$0xff]
    %v451 = vld [vmem:[#allocation8 + $0x98] sm:$0xf]
    %v452 = vld [vmem:[#allocation8 + $0x9c] sm:$0xff]
    %v453 = vld [vmem:[#allocation8 + $0xa4] sm:$0xf]
    %v454 = vld [vmem:[#allocation8 + $0xa8] sm:$0xff]
    %v455 = vld [vmem:[#allocation8 + $0xb0] sm:$0xf]
    %v456 = vld [vmem:[#allocation8 + $0xb4] sm:$0xff]
    %v457 = vld [vmem:[#allocation8 + $0xbc] sm:$0xf]
    %v458 = vld [vmem:[#allocation8 + $0xc0] sm:$0xff]
    %v459 = vld [vmem:[#allocation8 + $0xc8] sm:$0xf]
    %v460 = vld [vmem:[#allocation8 + $0xcc] sm:$0xff]
    %v461 = vld [vmem:[#allocation8 + $0xd4] sm:$0xf]
    %v462 = vld [vmem:[#allocation8 + $0xd8] sm:$0xff]
    %v463 = vld [vmem:[#allocation8 + $0xe0] sm:$0xf]
    %v464 = vld [vmem:[#allocation8 + $0xe4] sm:$0xff]
    %v465 = vld [vmem:[#allocation8 + $0xec] sm:$0xf]
    %v466 = vld [vmem:[#allocation8 + $0xf0] sm:$0xff]
    %v467 = vld [vmem:[#allocation8 + $0xf8] sm:$0xf]
    %v468 = vld [vmem:[#allocation8 + $0xfc] sm:$0xff]
    %v469 = vld [vmem:[#allocation8 + $0x104] sm:$0xf]
    %v470 = vld [vmem:[#allocation8 + $0x108] sm:$0xff]
    %v471 = vld [vmem:[#allocation8 + $0x110] sm:$0xf]
    %v472 = vld [vmem:[#allocation8 + $0x114] sm:$0xff]
    %v473 = vld [vmem:[#allocation8 + $0x11c] sm:$0xf]
    %v474 = vld [vmem:[#allocation8 + $0x120] sm:$0xff]
    %v475 = vld [vmem:[#allocation8 + $0x128] sm:$0xf]
    %v476 = vld [vmem:[#allocation8 + $0x12c] sm:$0xff]
    %v477 = vld [vmem:[#allocation8 + $0x134] sm:$0xf]
    %v478 = vld [vmem:[#allocation8 + $0x138] sm:$0xff]
    %v479 = vld [vmem:[#allocation8 + $0x140] sm:$0xf]
    %v480 = vld [vmem:[#allocation8 + $0x144] sm:$0xff]
    %v481 = vld [vmem:[#allocation8 + $0x14c] sm:$0xf]
    %v482 = vld [vmem:[#allocation8 + $0x150] sm:$0xff]
    %v483 = vld [vmem:[#allocation8 + $0x158] sm:$0xf]
    %v484 = vld [vmem:[#allocation8 + $0x15c] sm:$0xff]
    %v485 = vld [vmem:[#allocation8 + $0x164] sm:$0xf]
    %v486 = vld [vmem:[#allocation8 + $0x168] sm:$0xff]
    %v487 = vld [vmem:[#allocation8 + $0x170] sm:$0xf]
    %v488 = vld [vmem:[#allocation8 + $0x174] sm:$0xff]
    %v489 = vld [vmem:[#allocation8 + $0x17c] sm:$0xf]
    %v490 = vld [vmem:[#allocation8 + $0x180] sm:$0xff]
    %v491 = vld [vmem:[#allocation8 + $0x188] sm:$0xf]
    %v492 = vld [vmem:[#allocation8 + $0x18c] sm:$0xff]
    %v493 = vld [vmem:[#allocation8 + $0x194] sm:$0xf]
    %v494 = vld [vmem:[#allocation8 + $0x198] sm:$0xff]
    %v495 = vld [vmem:[#allocation8 + $0x1a0] sm:$0xf]
    %v496 = vld [vmem:[#allocation8 + $0x1a4] sm:$0xff]
    %v497 = vld [vmem:[#allocation8 + $0x1ac] sm:$0xf]
    %v498 = vld [vmem:[#allocation8 + $0x1b0] sm:$0xff]
    %v499 = vld [vmem:[#allocation8 + $0x1b8] sm:$0xf]
    %v500 = vld [vmem:[#allocation8 + $0x1bc] sm:$0xff]
    %v501 = vld [vmem:[#allocation8 + $0x1c4] sm:$0xf]
    %v502 = vld [vmem:[#allocation8 + $0x1c8] sm:$0xff]
    %v503 = vld [vmem:[#allocation8 + $0x1d0] sm:$0xf]
    %v504 = vld [vmem:[#allocation8 + $0x1d4] sm:$0xff]
    %v505 = vld [vmem:[#allocation8 + $0x1dc] sm:$0xf]
    %v506 = vld [vmem:[#allocation8 + $0x1e0] sm:$0xff]
    %v507 = vld [vmem:[#allocation8 + $0x1e8] sm:$0xf]
    %v508 = vld [vmem:[#allocation8 + $0x1ec] sm:$0xff]
    %v509 = vld [vmem:[#allocation8 + $0x1f4] sm:$0xf]
    %v510 = vld [vmem:[#allocation8 + $0x1f8] sm:$0xff]
    %v511 = vld [vmem:[#allocation8 + $0x200] sm:$0xf]
    %v512 = vld [vmem:[#allocation8 + $0x204] sm:$0xff]
    %v513 = vld [vmem:[#allocation8 + $0x20c] sm:$0xf]
    %v514 = vld [vmem:[#allocation8 + $0x210] sm:$0xff]
    %v515 = vld [vmem:[#allocation8 + $0x218] sm:$0xf]
    %v516 = vld [vmem:[#allocation8 + $0x21c] sm:$0xff]
    %v517 = vld [vmem:[#allocation8 + $0x224] sm:$0xf]
    %v518 = vld [vmem:[#allocation8 + $0x228] sm:$0xff]
    %v519 = vld [vmem:[#allocation8 + $0x230] sm:$0xf]
    %v520 = vld [vmem:[#allocation8 + $0x234] sm:$0xff]
    %v521 = vld [vmem:[#allocation8 + $0x23c] sm:$0xf]
    %s522 = scalar_lea.vmem [#allocation5], 5
    %v523 = vld [vmem:[%s522] ss:$8 sm:$0x7]
    %v525 = vlaneseq
    %v526 = vshrl.u32 %v525, 7
    %v527 = vsub.s32 0, %v526
    %v528 = vrot.slane %v523, %v527
    %v529 = vlaneseq
    %v530 = vshrl.u32 %v529, 7
    %v531 = vsub.s32 1, %v530
    %v532 = vrot.slane %v523, %v531
    %v533 = vlaneseq
    %v534 = vshrl.u32 %v533, 7
    %v535 = vsub.s32 2, %v534
    %v536 = vrot.slane %v523, %v535
    %v636 = vunpack.c.l.b16 %v426
    %v637 = vunpack.c.h.b16 %v426
    %v638 = vunpack.c.l.b16 %v427
    %v639 = vunpack.c.l.b16 %v428
    %v640 = vunpack.c.h.b16 %v428
    %v641 = vunpack.c.l.b16 %v429
    %v642 = vunpack.c.l.b16 %v430
    %v643 = vunpack.c.h.b16 %v430
    %v644 = vunpack.c.l.b16 %v431
    %v645 = vunpack.c.l.b16 %v432
    %v646 = vunpack.c.h.b16 %v432
    %v647 = vunpack.c.l.b16 %v433
    %v648 = vunpack.c.l.b16 %v434
    %v649 = vunpack.c.h.b16 %v434
    %v650 = vunpack.c.l.b16 %v435
    %v651 = vunpack.c.l.b16 %v436
    %v652 = vunpack.c.h.b16 %v436
    %v653 = vunpack.c.l.b16 %v437
    %v654 = vunpack.c.l.b16 %v438
    %v655 = vunpack.c.h.b16 %v438
    %v656 = vunpack.c.l.b16 %v439
    %v657 = vunpack.c.l.b16 %v440
    %v658 = vunpack.c.h.b16 %v440
    %v659 = vunpack.c.l.b16 %v441
    %v660 = vunpack.c.l.b16 %v442
    %v661 = vunpack.c.h.b16 %v442
    %v662 = vunpack.c.l.b16 %v443
    %v663 = vunpack.c.l.b16 %v444
    %v664 = vunpack.c.h.b16 %v444
    %v665 = vunpack.c.l.b16 %v445
    %v666 = vunpack.c.l.b16 %v446
    %v667 = vunpack.c.h.b16 %v446
    %v668 = vunpack.c.l.b16 %v447
    %v669 = vunpack.c.l.b16 %v448
    %v670 = vunpack.c.h.b16 %v448
    %v671 = vunpack.c.l.b16 %v449
    %v672 = vunpack.c.l.b16 %v450
    %v673 = vunpack.c.h.b16 %v450
    %v674 = vunpack.c.l.b16 %v451
    %v675 = vunpack.c.l.b16 %v452
    %v676 = vunpack.c.h.b16 %v452
    %v677 = vunpack.c.l.b16 %v453
    %v678 = vunpack.c.l.b16 %v454
    %v679 = vunpack.c.h.b16 %v454
    %v680 = vunpack.c.l.b16 %v455
    %v681 = vunpack.c.l.b16 %v456
    %v682 = vunpack.c.h.b16 %v456
    %v683 = vunpack.c.l.b16 %v457
    %v684 = vunpack.c.l.b16 %v458
    %v685 = vunpack.c.h.b16 %v458
    %v686 = vunpack.c.l.b16 %v459
    %v687 = vunpack.c.l.b16 %v460
    %v688 = vunpack.c.h.b16 %v460
    %v689 = vunpack.c.l.b16 %v461
    %v690 = vunpack.c.l.b16 %v462
    %v691 = vunpack.c.h.b16 %v462
    %v692 = vunpack.c.l.b16 %v463
    %v693 = vunpack.c.l.b16 %v464
    %v694 = vunpack.c.h.b16 %v464
    %v695 = vunpack.c.l.b16 %v465
    %v696 = vunpack.c.l.b16 %v466
    %v697 = vunpack.c.h.b16 %v466
    %v698 = vunpack.c.l.b16 %v467
    %v699 = vunpack.c.l.b16 %v468
    %v700 = vunpack.c.h.b16 %v468
    %v701 = vunpack.c.l.b16 %v469
    %v702 = vunpack.c.l.b16 %v470
    %v703 = vunpack.c.h.b16 %v470
    %v704 = vunpack.c.l.b16 %v471
    %v705 = vunpack.c.l.b16 %v472
    %v706 = vunpack.c.h.b16 %v472
    %v707 = vunpack.c.l.b16 %v473
    %v708 = vunpack.c.l.b16 %v474
    %v709 = vunpack.c.h.b16 %v474
    %v710 = vunpack.c.l.b16 %v475
    %v711 = vunpack.c.l.b16 %v476
    %v712 = vunpack.c.h.b16 %v476
    %v713 = vunpack.c.l.b16 %v477
    %v714 = vunpack.c.l.b16 %v478
    %v715 = vunpack.c.h.b16 %v478
    %v716 = vunpack.c.l.b16 %v479
    %v717 = vunpack.c.l.b16 %v480
    %v718 = vunpack.c.h.b16 %v480
    %v719 = vunpack.c.l.b16 %v481
    %v720 = vunpack.c.l.b16 %v482
    %v721 = vunpack.c.h.b16 %v482
    %v722 = vunpack.c.l.b16 %v483
    %v723 = vunpack.c.l.b16 %v484
    %v724 = vunpack.c.h.b16 %v484
    %v725 = vunpack.c.l.b16 %v485
    %v726 = vunpack.c.l.b16 %v486
    %v727 = vunpack.c.h.b16 %v486
    %v728 = vunpack.c.l.b16 %v487
    %v729 = vunpack.c.l.b16 %v488
    %v730 = vunpack.c.h.b16 %v488
    %v731 = vunpack.c.l.b16 %v489
    %v732 = vunpack.c.l.b16 %v490
    %v733 = vunpack.c.h.b16 %v490
    %v734 = vunpack.c.l.b16 %v491
    %v735 = vunpack.c.l.b16 %v492
    %v736 = vunpack.c.h.b16 %v492
    %v737 = vunpack.c.l.b16 %v493
    %v738 = vunpack.c.l.b16 %v494
    %v739 = vunpack.c.h.b16 %v494
    %v740 = vunpack.c.l.b16 %v495
    %v741 = vunpack.c.l.b16 %v496
    %v742 = vunpack.c.h.b16 %v496
    %v743 = vunpack.c.l.b16 %v497
    %v744 = vunpack.c.l.b16 %v498
    %v745 = vunpack.c.h.b16 %v498
    %v746 = vunpack.c.l.b16 %v499
    %v747 = vunpack.c.l.b16 %v500
    %v748 = vunpack.c.h.b16 %v500
    %v749 = vunpack.c.l.b16 %v501
    %v750 = vunpack.c.l.b16 %v502
    %v751 = vunpack.c.h.b16 %v502
    %v752 = vunpack.c.l.b16 %v503
    %v753 = vunpack.c.l.b16 %v504
    %v754 = vunpack.c.h.b16 %v504
    %v755 = vunpack.c.l.b16 %v505
    %v756 = vunpack.c.l.b16 %v506
    %v757 = vunpack.c.h.b16 %v506
    %v758 = vunpack.c.l.b16 %v507
    %v759 = vunpack.c.l.b16 %v508
    %v760 = vunpack.c.h.b16 %v508
    %v761 = vunpack.c.l.b16 %v509
    %v762 = vunpack.c.l.b16 %v510
    %v763 = vunpack.c.h.b16 %v510
    %v764 = vunpack.c.l.b16 %v511
    %v765 = vunpack.c.l.b16 %v512
    %v766 = vunpack.c.h.b16 %v512
    %v767 = vunpack.c.l.b16 %v513
    %v768 = vunpack.c.l.b16 %v514
    %v769 = vunpack.c.h.b16 %v514
    %v770 = vunpack.c.l.b16 %v515
    %v771 = vunpack.c.l.b16 %v516
    %v772 = vunpack.c.h.b16 %v516
    %v773 = vunpack.c.l.b16 %v517
    %v774 = vunpack.c.l.b16 %v518
    %v775 = vunpack.c.h.b16 %v518
    %v776 = vunpack.c.l.b16 %v519
    %v777 = vunpack.c.l.b16 %v520
    %v778 = vunpack.c.h.b16 %v520
    %v779 = vunpack.c.l.b16 %v521
    %v780 = vpack.c.b16 %v639, %v636
    %v781 = vpack.c.b16 %v640, %v637
    %v782 = vpack.c.b16 %v641, %v638
    %v783 = vpack.c.b16 %v645, %v642
    %v784 = vpack.c.b16 %v646, %v643
    %v785 = vpack.c.b16 %v647, %v644
    %v786 = vpack.c.b16 %v651, %v648
    %v787 = vpack.c.b16 %v652, %v649
    %v788 = vpack.c.b16 %v653, %v650
    %v789 = vpack.c.b16 %v657, %v654
    %v790 = vpack.c.b16 %v658, %v655
    %v791 = vpack.c.b16 %v659, %v656
    %v792 = vpack.c.b16 %v663, %v660
    %v793 = vpack.c.b16 %v664, %v661
    %v794 = vpack.c.b16 %v665, %v662
    %v795 = vpack.c.b16 %v669, %v666
    %v796 = vpack.c.b16 %v670, %v667
    %v797 = vpack.c.b16 %v671, %v668
    %v798 = vpack.c.b16 %v675, %v672
    %v799 = vpack.c.b16 %v676, %v673
    %v800 = vpack.c.b16 %v677, %v674
    %v801 = vpack.c.b16 %v681, %v678
    %v802 = vpack.c.b16 %v682, %v679
    %v803 = vpack.c.b16 %v683, %v680
    %v804 = vpack.c.b16 %v687, %v684
    %v805 = vpack.c.b16 %v688, %v685
    %v806 = vpack.c.b16 %v689, %v686
    %v807 = vpack.c.b16 %v693, %v690
    %v808 = vpack.c.b16 %v694, %v691
    %v809 = vpack.c.b16 %v695, %v692
    %v810 = vpack.c.b16 %v699, %v696
    %v811 = vpack.c.b16 %v700, %v697
    %v812 = vpack.c.b16 %v701, %v698
    %v813 = vpack.c.b16 %v705, %v702
    %v814 = vpack.c.b16 %v706, %v703
    %v815 = vpack.c.b16 %v707, %v704
    %v816 = vpack.c.b16 %v711, %v708
    %v817 = vpack.c.b16 %v712, %v709
    %v818 = vpack.c.b16 %v713, %v710
    %v819 = vpack.c.b16 %v717, %v714
    %v820 = vpack.c.b16 %v718, %v715
    %v821 = vpack.c.b16 %v719, %v716
    %v822 = vpack.c.b16 %v723, %v720
    %v823 = vpack.c.b16 %v724, %v721
    %v824 = vpack.c.b16 %v725, %v722
    %v825 = vpack.c.b16 %v729, %v726
    %v826 = vpack.c.b16 %v730, %v727
    %v827 = vpack.c.b16 %v731, %v728
    %v828 = vpack.c.b16 %v735, %v732
    %v829 = vpack.c.b16 %v736, %v733
    %v830 = vpack.c.b16 %v737, %v734
    %v831 = vpack.c.b16 %v741, %v738
    %v832 = vpack.c.b16 %v742, %v739
    %v833 = vpack.c.b16 %v743, %v740
    %v834 = vpack.c.b16 %v747, %v744
    %v835 = vpack.c.b16 %v748, %v745
    %v836 = vpack.c.b16 %v749, %v746
    %v837 = vpack.c.b16 %v753, %v750
    %v838 = vpack.c.b16 %v754, %v751
    %v839 = vpack.c.b16 %v755, %v752
    %v840 = vpack.c.b16 %v759, %v756
    %v841 = vpack.c.b16 %v760, %v757
    %v842 = vpack.c.b16 %v761, %v758
    %v843 = vpack.c.b16 %v765, %v762
    %v844 = vpack.c.b16 %v766, %v763
    %v845 = vpack.c.b16 %v767, %v764
    %v846 = vpack.c.b16 %v771, %v768
    %v847 = vpack.c.b16 %v772, %v769
    %v848 = vpack.c.b16 %v773, %v770
    %v849 = vpack.c.b16 %v777, %v774
    %v850 = vpack.c.b16 %v778, %v775
    %v851 = vpack.c.b16 %v779, %v776
    %924 = vmatprep.subr.bf16.mxu0 %v781
    %925 = vmatpush1.bf16.msra.mxu0 %v780
    %926 = vmatprep.subr.bf16.mxu0 %v784
    %927 = vmatpush1.bf16.msra.mxu0 %v783
    %928 = vmatprep.subr.bf16.mxu0 %v787
    %929 = vmatpush1.bf16.msra.mxu0 %v786
    %930 = vmatprep.subr.bf16.mxu0 %v790
    %931 = vmatpush1.bf16.msra.mxu0 %v789
    %932 = vmatprep.subr.bf16.mxu0 %v793
    %933 = vmatpush1.bf16.msra.mxu0 %v792
    %934 = vmatprep.subr.bf16.mxu0 %v796
    %935 = vmatpush1.bf16.msra.mxu0 %v795
    %936 = vmatprep.subr.bf16.mxu0 %v799
    %937 = vmatpush1.bf16.msra.mxu0 %v798
    %938 = vmatprep.subr.bf16.mxu0 %v802
    %939 = vmatpush1.bf16.msra.mxu0 %v801
    %940 = vmatprep.subr.bf16.mxu0 %v805
    %941 = vmatpush1.bf16.msra.mxu0 %v804
    %942 = vmatprep.subr.bf16.mxu0 %v808
    %943 = vmatpush1.bf16.msra.mxu0 %v807
    %944 = vmatprep.subr.bf16.mxu0 %v811
    %945 = vmatpush1.bf16.msra.mxu0 %v810
    %946 = vmatprep.subr.bf16.mxu0 %v814
    %947 = vmatpush1.bf16.msra.mxu0 %v813
    %948 = vmatprep.subr.bf16.mxu0 %v817
    %949 = vmatpush1.bf16.msra.mxu0 %v816
    %950 = vmatprep.subr.bf16.mxu0 %v820
    %951 = vmatpush1.bf16.msra.mxu0 %v819
    %952 = vmatprep.subr.bf16.mxu0 %v823
    %953 = vmatpush1.bf16.msra.mxu0 %v822
    %954 = vmatprep.subr.bf16.mxu0 %v826
    %955 = vmatpush1.bf16.msra.mxu0 %v825
    %956 = vmatprep.mubr.bf16.mxu0 %v424
    %957 = vmatmul.mubr.bf16.gmra.mrb[0].mxu0 %v423
    %v958 = vpop.f32.mrb[0].mxu0
    %v959 = vadd.f32 %v528, %v958
    %v960 = vpop.f32.mrb[0].mxu0
    %v961 = vadd.f32 %v532, %v960
    %v962 = vpop.f32.mrb[0].mxu0
    %v963 = vpop.f32.mrb[0].mxu0
    %964 = vdwg.mxu0
    %965 = vmatprep.subr.bf16.mxu0 %v829
    %966 = vmatpush1.bf16.msra.mxu0 %v828
    %967 = vmatprep.subr.bf16.mxu0 %v832
    %968 = vmatpush1.bf16.msra.mxu0 %v831
    %969 = vmatprep.subr.bf16.mxu0 %v835
    %970 = vmatpush1.bf16.msra.mxu0 %v834
    %971 = vmatprep.subr.bf16.mxu0 %v838
    %972 = vmatpush1.bf16.msra.mxu0 %v837
    %973 = vmatprep.subr.bf16.mxu0 %v841
    %974 = vmatpush1.bf16.msra.mxu0 %v840
    %975 = vmatprep.subr.bf16.mxu0 %v844
    %976 = vmatpush1.bf16.msra.mxu0 %v843
    %977 = vmatprep.subr.bf16.mxu0 %v847
    %978 = vmatpush1.bf16.msra.mxu0 %v846
    %979 = vmatprep.subr.bf16.mxu0 %v850
    %980 = vmatpush1.bf16.msra.mxu0 %v849
    %981 = vmatprep.subr.bf16.mxu0 0
    %982 = vmatpush1.bf16.msra.mxu0 0
    %983 = vmatprep.subr.bf16.mxu0 0
    %984 = vmatpush1.bf16.msra.mxu0 0
    %985 = vmatprep.subr.bf16.mxu0 0
    %986 = vmatpush1.bf16.msra.mxu0 0
    %987 = vmatprep.subr.bf16.mxu0 0
    %988 = vmatpush1.bf16.msra.mxu0 0
    %989 = vmatprep.subr.bf16.mxu0 0
    %990 = vmatpush1.bf16.msra.mxu0 0
    %991 = vmatprep.subr.bf16.mxu0 0
    %992 = vmatpush1.bf16.msra.mxu0 0
    %993 = vmatprep.subr.bf16.mxu0 0
    %994 = vmatpush1.bf16.msra.mxu0 0
    %995 = vmatprep.subr.bf16.mxu0 0
    %996 = vmatpush1.bf16.msra.mxu0 0
    %997 = vmatprep.mubr.bf16.mxu0 0
    %998 = vmatmul.mubr.bf16.gmra.mrb[0].mxu0 %v425
    %v999 = vpop.f32.mrb[0].mxu0
    %v1000 = vadd.f32 %v959, %v999
    %v1001 = vpop.f32.mrb[0].mxu0
    %v1002 = vadd.f32 %v961, %v1001
    %v1003 = vpop.f32.mrb[0].mxu0
    %v1004 = vpop.f32.mrb[0].mxu0
    %1005 = vdwg.mxu0
    %1006 = vmatprep.subr.bf16.mxu0 0
    %1007 = vmatpush1.bf16.msra.mxu0 %v782
    %1008 = vmatprep.subr.bf16.mxu0 0
    %1009 = vmatpush1.bf16.msra.mxu0 %v785
    %1010 = vmatprep.subr.bf16.mxu0 0
    %1011 = vmatpush1.bf16.msra.mxu0 %v788
    %1012 = vmatprep.subr.bf16.mxu0 0
    %1013 = vmatpush1.bf16.msra.mxu0 %v791
    %1014 = vmatprep.subr.bf16.mxu0 0
    %1015 = vmatpush1.bf16.msra.mxu0 %v794
    %1016 = vmatprep.subr.bf16.mxu0 0
    %1017 = vmatpush1.bf16.msra.mxu0 %v797
    %1018 = vmatprep.subr.bf16.mxu0 0
    %1019 = vmatpush1.bf16.msra.mxu0 %v800
    %1020 = vmatprep.subr.bf16.mxu0 0
    %1021 = vmatpush1.bf16.msra.mxu0 %v803
    %1022 = vmatprep.subr.bf16.mxu0 0
    %1023 = vmatpush1.bf16.msra.mxu0 %v806
    %1024 = vmatprep.subr.bf16.mxu0 0
    %1025 = vmatpush1.bf16.msra.mxu0 %v809
    %1026 = vmatprep.subr.bf16.mxu0 0
    %1027 = vmatpush1.bf16.msra.mxu0 %v812
    %1028 = vmatprep.subr.bf16.mxu0 0
    %1029 = vmatpush1.bf16.msra.mxu0 %v815
    %1030 = vmatprep.subr.bf16.mxu0 0
    %1031 = vmatpush1.bf16.msra.mxu0 %v818
    %1032 = vmatprep.subr.bf16.mxu0 0
    %1033 = vmatpush1.bf16.msra.mxu0 %v821
    %1034 = vmatprep.subr.bf16.mxu0 0
    %1035 = vmatpush1.bf16.msra.mxu0 %v824
    %1036 = vmatprep.subr.bf16.mxu0 0
    %1037 = vmatpush1.bf16.msra.mxu0 %v827
    %1038 = vmatprep.mubr.bf16.mxu0 %v424
    %1039 = vmatmul.mubr.bf16.gmra.mrb[0].mxu0 %v423
    %v1040 = vpop.f32.mrb[0].mxu0
    %v1041 = vadd.f32 %v536, %v1040
    %v1042 = vpop.f32.mrb[0].mxu0
    %v1043 = vpop.f32.mrb[0].mxu0
    %v1044 = vpop.f32.mrb[0].mxu0
    %1045 = vdwg.mxu0
    %1046 = vmatprep.subr.bf16.mxu0 0
    %1047 = vmatpush1.bf16.msra.mxu0 %v830
    %1048 = vmatprep.subr.bf16.mxu0 0
    %1049 = vmatpush1.bf16.msra.mxu0 %v833
    %1050 = vmatprep.subr.bf16.mxu0 0
    %1051 = vmatpush1.bf16.msra.mxu0 %v836
    %1052 = vmatprep.subr.bf16.mxu0 0
    %1053 = vmatpush1.bf16.msra.mxu0 %v839
    %1054 = vmatprep.subr.bf16.mxu0 0
    %1055 = vmatpush1.bf16.msra.mxu0 %v842
    %1056 = vmatprep.subr.bf16.mxu0 0
    %1057 = vmatpush1.bf16.msra.mxu0 %v845
    %1058 = vmatprep.subr.bf16.mxu0 0
    %1059 = vmatpush1.bf16.msra.mxu0 %v848
    %1060 = vmatprep.subr.bf16.mxu0 0
    %1061 = vmatpush1.bf16.msra.mxu0 %v851
    %1062 = vmatprep.subr.bf16.mxu0 0
    %1063 = vmatpush1.bf16.msra.mxu0 0
    %1064 = vmatprep.subr.bf16.mxu0 0
    %1065 = vmatpush1.bf16.msra.mxu0 0
    %1066 = vmatprep.subr.bf16.mxu0 0
    %1067 = vmatpush1.bf16.msra.mxu0 0
    %1068 = vmatprep.subr.bf16.mxu0 0
    %1069 = vmatpush1.bf16.msra.mxu0 0
    %1070 = vmatprep.subr.bf16.mxu0 0
    %1071 = vmatpush1.bf16.msra.mxu0 0
    %1072 = vmatprep.subr.bf16.mxu0 0
    %1073 = vmatpush1.bf16.msra.mxu0 0
    %1074 = vmatprep.subr.bf16.mxu0 0
    %1075 = vmatpush1.bf16.msra.mxu0 0
    %1076 = vmatprep.subr.bf16.mxu0 0
    %1077 = vmatpush1.bf16.msra.mxu0 0
    %1078 = vmatprep.mubr.bf16.mxu0 0
    %1079 = vmatmul.mubr.bf16.gmra.mrb[0].mxu0 %v425
    %v1080 = vpop.f32.mrb[0].mxu0
    %v1081 = vadd.f32 %v1041, %v1080
    %v1082 = vpop.f32.mrb[0].mxu0
    %v1083 = vpop.f32.mrb[0].mxu0
    %v1084 = vpop.f32.mrb[0].mxu0
    %1085 = vdwg.mxu0
    %s1086 = scalar_lea.vmem [#allocation5], 6
    %v1087 = vld [vmem:[%s1086] ss:$8 sm:$0x7]
    %s1088 = scalar_lea.vmem [#allocation5], 7
    %v1089 = vld [vmem:[%s1088] ss:$8 sm:$0x7]
    %v1090 = vrot.slane %v1000, 4
    %v1091 = vadd.f32 %v1000, %v1090
    %v1092 = vrot.slane %v1091, 2
    %v1093 = vadd.f32 %v1091, %v1092
    %v1094 = vrot.slane %v1093, 1
    %v1095 = vadd.f32 %v1093, %v1094
    %v1096 = vrot.slane %v1002, 4
    %v1097 = vadd.f32 %v1002, %v1096
    %v1098 = vrot.slane %v1097, 2
    %v1099 = vadd.f32 %v1097, %v1098
    %v1100 = vrot.slane %v1099, 1
    %v1101 = vadd.f32 %v1099, %v1100
    %v1102 = vrot.slane %v1081, 4
    %v1103 = vadd.f32 %v1081, %v1102
    %v1104 = vrot.slane %v1103, 2
    %v1105 = vadd.f32 %v1103, %v1104
    %v1106 = vrot.slane %v1105, 1
    %v1107 = vadd.f32 %v1105, %v1106
    %v1108 = vmul.f32 %v1095, 0.125
    %v1109 = vmul.f32 %v1101, 0.125
    %v1110 = vmul.f32 %v1107, 0.125
    %v1111 = vmul.f32 %v1000, %v1000
    %v1112 = vmul.f32 %v1002, %v1002
    %v1113 = vmul.f32 %v1081, %v1081
    %v1114 = vrot.slane %v1111, 4
    %v1115 = vadd.f32 %v1111, %v1114
    %v1116 = vrot.slane %v1115, 2
    %v1117 = vadd.f32 %v1115, %v1116
    %v1118 = vrot.slane %v1117, 1
    %v1119 = vadd.f32 %v1117, %v1118
    %v1120 = vrot.slane %v1112, 4
    %v1121 = vadd.f32 %v1112, %v1120
    %v1122 = vrot.slane %v1121, 2
    %v1123 = vadd.f32 %v1121, %v1122
    %v1124 = vrot.slane %v1123, 1
    %v1125 = vadd.f32 %v1123, %v1124
    %v1126 = vrot.slane %v1113, 4
    %v1127 = vadd.f32 %v1113, %v1126
    %v1128 = vrot.slane %v1127, 2
    %v1129 = vadd.f32 %v1127, %v1128
    %v1130 = vrot.slane %v1129, 1
    %v1131 = vadd.f32 %v1129, %v1130
    %v1132 = vmul.f32 %v1119, 0.125
    %v1133 = vmul.f32 %v1125, 0.125
    %v1134 = vmul.f32 %v1131, 0.125
    %v1135 = vmul.f32 %v1108, %v1108
    %v1136 = vmul.f32 %v1109, %v1109
    %v1137 = vmul.f32 %v1110, %v1110
    %v1138 = vsub.f32 %v1132, %v1135
    %v1139 = vsub.f32 %v1133, %v1136
    %v1140 = vsub.f32 %v1134, %v1137
    %v1141 = vmax.f32 %v1138, 0.0
    %v1142 = vmax.f32 %v1139, 0.0
    %v1143 = vmax.f32 %v1140, 0.0
    %v1144 = vadd.f32 %v1141, 1e-05
    %v1145 = vadd.f32 %v1142, 1e-05
    %v1146 = vadd.f32 %v1143, 1e-05
    %v1147 = vrsqrt.pop %v1144
    %v1148 = vrsqrt.pop %v1145
    %v1149 = vrsqrt.pop %v1146
    %v1153 = vcombine.low %v1147, %v1148
    %v1155 = vunpack.c.l.s4 1966171168
    %v1156 = vunpack.c.0.s8 %v1155
    %v1157 = vlaneseq
    %v1158 = vshrl.u32 %v1157, 7
    %v1159 = vsub.s32 %v1156, %v1158
    %v1160 = vrot.slane %v1153, %v1159
    %v1162 = vunpack.c.l.s4 1966171168
    %v1163 = vunpack.c.0.s8 %v1162
    %v1164 = vlaneseq
    %v1165 = vshrl.u32 %v1164, 7
    %v1166 = vsub.s32 %v1163, %v1165
    %v1167 = vrot.slane %v1149, %v1166
    %v1168 = vcombine.low %v1160, %v1167
    %v1170 = vunpack.c.l.s4 1966171168
    %v1171 = vunpack.c.0.s8 %v1170
    %v1172 = vlaneseq
    %v1173 = vshrl.u32 %v1172, 7
    %v1174 = vsub.s32 %v1171, %v1173
    %v1175 = vrot.slane %v1168, %v1174
    %v1177 = vmul.f32 %v1087, %v1175
    %v1179 = vlaneseq
    %v1180 = vshrl.u32 %v1179, 7
    %v1181 = vsub.s32 0, %v1180
    %v1182 = vrot.slane %v1177, %v1181
    %v1183 = vlaneseq
    %v1184 = vshrl.u32 %v1183, 7
    %v1185 = vsub.s32 1, %v1184
    %v1186 = vrot.slane %v1177, %v1185
    %v1187 = vlaneseq
    %v1188 = vshrl.u32 %v1187, 7
    %v1189 = vsub.s32 2, %v1188
    %v1190 = vrot.slane %v1177, %v1189
    %v1194 = vmul.f32 %v1108, %v1182
    %v1195 = vmul.f32 %v1109, %v1186
    %v1196 = vmul.f32 %v1110, %v1190
    %v1200 = vcombine.low %v1194, %v1195
    %v1202 = vunpack.c.l.s4 1966171168
    %v1203 = vunpack.c.0.s8 %v1202
    %v1204 = vlaneseq
    %v1205 = vshrl.u32 %v1204, 7
    %v1206 = vsub.s32 %v1203, %v1205
    %v1207 = vrot.slane %v1200, %v1206
    %v1209 = vunpack.c.l.s4 1966171168
    %v1210 = vunpack.c.0.s8 %v1209
    %v1211 = vlaneseq
    %v1212 = vshrl.u32 %v1211, 7
    %v1213 = vsub.s32 %v1210, %v1212
    %v1214 = vrot.slane %v1196, %v1213
    %v1215 = vcombine.low %v1207, %v1214
    %v1217 = vunpack.c.l.s4 1966171168
    %v1218 = vunpack.c.0.s8 %v1217
    %v1219 = vlaneseq
    %v1220 = vshrl.u32 %v1219, 7
    %v1221 = vsub.s32 %v1218, %v1220
    %v1222 = vrot.slane %v1215, %v1221
    %v1224 = vsub.f32 %v1089, %v1222
    %v1225 = vmul.f32 %v1000, %v1182
    %v1226 = vmul.f32 %v1002, %v1186
    %v1227 = vmul.f32 %v1081, %v1190
    %v1229 = vlaneseq
    %v1230 = vshrl.u32 %v1229, 7
    %v1231 = vsub.s32 0, %v1230
    %v1232 = vrot.slane %v1224, %v1231
    %v1233 = vlaneseq
    %v1234 = vshrl.u32 %v1233, 7
    %v1235 = vsub.s32 1, %v1234
    %v1236 = vrot.slane %v1224, %v1235
    %v1237 = vlaneseq
    %v1238 = vshrl.u32 %v1237, 7
    %v1239 = vsub.s32 2, %v1238
    %v1240 = vrot.slane %v1224, %v1239
    %v1244 = vadd.f32 %v1225, %v1232
    %v1245 = vadd.f32 %v1226, %v1236
    %v1246 = vadd.f32 %v1227, %v1240
    %v1247 = vmax.f32 %v1244, 0.0
    %v1248 = vmax.f32 %v1245, 0.0
    %v1249 = vmax.f32 %v1246, 0.0
    %v1250 = vpack.c.bf16 %v1247, %v1247
    %v1251 = vpack.c.bf16 %v1248, %v1248
    %v1252 = vpack.c.bf16 %v1249, %v1249
    %v1253 = vld [vmem:[#allocation10] sm:$0xff]
    %v1254 = vld [vmem:[#allocation10 + $0x8] sm:$0xf]
    %v1255 = vld [vmem:[#allocation10 + $0xc] sm:$0xff]
    %v1256 = vld [vmem:[#allocation10 + $0x14] sm:$0xf]
    %v1257 = vld [vmem:[#allocation10 + $0x18] sm:$0xff]
    %v1258 = vld [vmem:[#allocation10 + $0x20] sm:$0xf]
    %v1259 = vld [vmem:[#allocation10 + $0x24] sm:$0xff]
    %v1260 = vld [vmem:[#allocation10 + $0x2c] sm:$0xf]
    %v1261 = vld [vmem:[#allocation10 + $0x30] sm:$0xff]
    %v1262 = vld [vmem:[#allocation10 + $0x38] sm:$0xf]
    %v1263 = vld [vmem:[#allocation10 + $0x3c] sm:$0xff]
    %v1264 = vld [vmem:[#allocation10 + $0x44] sm:$0xf]
    %v1265 = vld [vmem:[#allocation10 + $0x48] sm:$0xff]
    %v1266 = vld [vmem:[#allocation10 + $0x50] sm:$0xf]
    %v1267 = vld [vmem:[#allocation10 + $0x54] sm:$0xff]
    %v1268 = vld [vmem:[#allocation10 + $0x5c] sm:$0xf]
    %v1269 = vld [vmem:[#allocation10 + $0x60] sm:$0xff]
    %v1270 = vld [vmem:[#allocation10 + $0x68] sm:$0xf]
    %v1271 = vld [vmem:[#allocation10 + $0x6c] sm:$0xff]
    %v1272 = vld [vmem:[#allocation10 + $0x74] sm:$0xf]
    %v1273 = vld [vmem:[#allocation10 + $0x78] sm:$0xff]
    %v1274 = vld [vmem:[#allocation10 + $0x80] sm:$0xf]
    %v1275 = vld [vmem:[#allocation10 + $0x84] sm:$0xff]
    %v1276 = vld [vmem:[#allocation10 + $0x8c] sm:$0xf]
    %v1277 = vld [vmem:[#allocation10 + $0x90] sm:$0xff]
    %v1278 = vld [vmem:[#allocation10 + $0x98] sm:$0xf]
    %v1279 = vld [vmem:[#allocation10 + $0x9c] sm:$0xff]
    %v1280 = vld [vmem:[#allocation10 + $0xa4] sm:$0xf]
    %v1281 = vld [vmem:[#allocation10 + $0xa8] sm:$0xff]
    %v1282 = vld [vmem:[#allocation10 + $0xb0] sm:$0xf]
    %v1283 = vld [vmem:[#allocation10 + $0xb4] sm:$0xff]
    %v1284 = vld [vmem:[#allocation10 + $0xbc] sm:$0xf]
    %v1285 = vld [vmem:[#allocation10 + $0xc0] sm:$0xff]
    %v1286 = vld [vmem:[#allocation10 + $0xc8] sm:$0xf]
    %v1287 = vld [vmem:[#allocation10 + $0xcc] sm:$0xff]
    %v1288 = vld [vmem:[#allocation10 + $0xd4] sm:$0xf]
    %v1289 = vld [vmem:[#allocation10 + $0xd8] sm:$0xff]
    %v1290 = vld [vmem:[#allocation10 + $0xe0] sm:$0xf]
    %v1291 = vld [vmem:[#allocation10 + $0xe4] sm:$0xff]
    %v1292 = vld [vmem:[#allocation10 + $0xec] sm:$0xf]
    %v1293 = vld [vmem:[#allocation10 + $0xf0] sm:$0xff]
    %v1294 = vld [vmem:[#allocation10 + $0xf8] sm:$0xf]
    %v1295 = vld [vmem:[#allocation10 + $0xfc] sm:$0xff]
    %v1296 = vld [vmem:[#allocation10 + $0x104] sm:$0xf]
    %v1297 = vld [vmem:[#allocation10 + $0x108] sm:$0xff]
    %v1298 = vld [vmem:[#allocation10 + $0x110] sm:$0xf]
    %v1299 = vld [vmem:[#allocation10 + $0x114] sm:$0xff]
    %v1300 = vld [vmem:[#allocation10 + $0x11c] sm:$0xf]
    %v1301 = vld [vmem:[#allocation10 + $0x120] sm:$0xff]
    %v1302 = vld [vmem:[#allocation10 + $0x128] sm:$0xf]
    %v1303 = vld [vmem:[#allocation10 + $0x12c] sm:$0xff]
    %v1304 = vld [vmem:[#allocation10 + $0x134] sm:$0xf]
    %v1305 = vld [vmem:[#allocation10 + $0x138] sm:$0xff]
    %v1306 = vld [vmem:[#allocation10 + $0x140] sm:$0xf]
    %v1307 = vld [vmem:[#allocation10 + $0x144] sm:$0xff]
    %v1308 = vld [vmem:[#allocation10 + $0x14c] sm:$0xf]
    %v1309 = vld [vmem:[#allocation10 + $0x150] sm:$0xff]
    %v1310 = vld [vmem:[#allocation10 + $0x158] sm:$0xf]
    %v1311 = vld [vmem:[#allocation10 + $0x15c] sm:$0xff]
    %v1312 = vld [vmem:[#allocation10 + $0x164] sm:$0xf]
    %v1313 = vld [vmem:[#allocation10 + $0x168] sm:$0xff]
    %v1314 = vld [vmem:[#allocation10 + $0x170] sm:$0xf]
    %v1315 = vld [vmem:[#allocation10 + $0x174] sm:$0xff]
    %v1316 = vld [vmem:[#allocation10 + $0x17c] sm:$0xf]
    %v1317 = vld [vmem:[#allocation10 + $0x180] sm:$0xff]
    %v1318 = vld [vmem:[#allocation10 + $0x188] sm:$0xf]
    %v1319 = vld [vmem:[#allocation10 + $0x18c] sm:$0xff]
    %v1320 = vld [vmem:[#allocation10 + $0x194] sm:$0xf]
    %v1321 = vld [vmem:[#allocation10 + $0x198] sm:$0xff]
    %v1322 = vld [vmem:[#allocation10 + $0x1a0] sm:$0xf]
    %v1323 = vld [vmem:[#allocation10 + $0x1a4] sm:$0xff]
    %v1324 = vld [vmem:[#allocation10 + $0x1ac] sm:$0xf]
    %v1325 = vld [vmem:[#allocation10 + $0x1b0] sm:$0xff]
    %v1326 = vld [vmem:[#allocation10 + $0x1b8] sm:$0xf]
    %v1327 = vld [vmem:[#allocation10 + $0x1bc] sm:$0xff]
    %v1328 = vld [vmem:[#allocation10 + $0x1c4] sm:$0xf]
    %v1329 = vld [vmem:[#allocation10 + $0x1c8] sm:$0xff]
    %v1330 = vld [vmem:[#allocation10 + $0x1d0] sm:$0xf]
    %v1331 = vld [vmem:[#allocation10 + $0x1d4] sm:$0xff]
    %v1332 = vld [vmem:[#allocation10 + $0x1dc] sm:$0xf]
    %v1333 = vld [vmem:[#allocation10 + $0x1e0] sm:$0xff]
    %v1334 = vld [vmem:[#allocation10 + $0x1e8] sm:$0xf]
    %v1335 = vld [vmem:[#allocation10 + $0x1ec] sm:$0xff]
    %v1336 = vld [vmem:[#allocation10 + $0x1f4] sm:$0xf]
    %v1337 = vld [vmem:[#allocation10 + $0x1f8] sm:$0xff]
    %v1338 = vld [vmem:[#allocation10 + $0x200] sm:$0xf]
    %v1339 = vld [vmem:[#allocation10 + $0x204] sm:$0xff]
    %v1340 = vld [vmem:[#allocation10 + $0x20c] sm:$0xf]
    %v1341 = vld [vmem:[#allocation10 + $0x210] sm:$0xff]
    %v1342 = vld [vmem:[#allocation10 + $0x218] sm:$0xf]
    %v1343 = vld [vmem:[#allocation10 + $0x21c] sm:$0xff]
    %v1344 = vld [vmem:[#allocation10 + $0x224] sm:$0xf]
    %v1345 = vld [vmem:[#allocation10 + $0x228] sm:$0xff]
    %v1346 = vld [vmem:[#allocation10 + $0x230] sm:$0xf]
    %v1347 = vld [vmem:[#allocation10 + $0x234] sm:$0xff]
    %v1348 = vld [vmem:[#allocation10 + $0x23c] sm:$0xf]
    %s1349 = scalar_lea.vmem [#allocation5], 24
    %v1350 = vld [vmem:[%s1349] ss:$8 sm:$0x7]
    %v1352 = vlaneseq
    %v1353 = vshrl.u32 %v1352, 7
    %v1354 = vsub.s32 0, %v1353
    %v1355 = vrot.slane %v1350, %v1354
    %v1356 = vlaneseq
    %v1357 = vshrl.u32 %v1356, 7
    %v1358 = vsub.s32 1, %v1357
    %v1359 = vrot.slane %v1350, %v1358
    %v1360 = vlaneseq
    %v1361 = vshrl.u32 %v1360, 7
    %v1362 = vsub.s32 2, %v1361
    %v1363 = vrot.slane %v1350, %v1362
    %v1463 = vunpack.c.l.b16 %v1253
    %v1464 = vunpack.c.h.b16 %v1253
    %v1465 = vunpack.c.l.b16 %v1254
    %v1466 = vunpack.c.l.b16 %v1255
    %v1467 = vunpack.c.h.b16 %v1255
    %v1468 = vunpack.c.l.b16 %v1256
    %v1469 = vunpack.c.l.b16 %v1257
    %v1470 = vunpack.c.h.b16 %v1257
    %v1471 = vunpack.c.l.b16 %v1258
    %v1472 = vunpack.c.l.b16 %v1259
    %v1473 = vunpack.c.h.b16 %v1259
    %v1474 = vunpack.c.l.b16 %v1260
    %v1475 = vunpack.c.l.b16 %v1261
    %v1476 = vunpack.c.h.b16 %v1261
    %v1477 = vunpack.c.l.b16 %v1262
    %v1478 = vunpack.c.l.b16 %v1263
    %v1479 = vunpack.c.h.b16 %v1263
    %v1480 = vunpack.c.l.b16 %v1264
    %v1481 = vunpack.c.l.b16 %v1265
    %v1482 = vunpack.c.h.b16 %v1265
    %v1483 = vunpack.c.l.b16 %v1266
    %v1484 = vunpack.c.l.b16 %v1267
    %v1485 = vunpack.c.h.b16 %v1267
    %v1486 = vunpack.c.l.b16 %v1268
    %v1487 = vunpack.c.l.b16 %v1269
    %v1488 = vunpack.c.h.b16 %v1269
    %v1489 = vunpack.c.l.b16 %v1270
    %v1490 = vunpack.c.l.b16 %v1271
    %v1491 = vunpack.c.h.b16 %v1271
    %v1492 = vunpack.c.l.b16 %v1272
    %v1493 = vunpack.c.l.b16 %v1273
    %v1494 = vunpack.c.h.b16 %v1273
    %v1495 = vunpack.c.l.b16 %v1274
    %v1496 = vunpack.c.l.b16 %v1275
    %v1497 = vunpack.c.h.b16 %v1275
    %v1498 = vunpack.c.l.b16 %v1276
    %v1499 = vunpack.c.l.b16 %v1277
    %v1500 = vunpack.c.h.b16 %v1277
    %v1501 = vunpack.c.l.b16 %v1278
    %v1502 = vunpack.c.l.b16 %v1279
    %v1503 = vunpack.c.h.b16 %v1279
    %v1504 = vunpack.c.l.b16 %v1280
    %v1505 = vunpack.c.l.b16 %v1281
    %v1506 = vunpack.c.h.b16 %v1281
    %v1507 = vunpack.c.l.b16 %v1282
    %v1508 = vunpack.c.l.b16 %v1283
    %v1509 = vunpack.c.h.b16 %v1283
    %v1510 = vunpack.c.l.b16 %v1284
    %v1511 = vunpack.c.l.b16 %v1285
    %v1512 = vunpack.c.h.b16 %v1285
    %v1513 = vunpack.c.l.b16 %v1286
    %v1514 = vunpack.c.l.b16 %v1287
    %v1515 = vunpack.c.h.b16 %v1287
    %v1516 = vunpack.c.l.b16 %v1288
    %v1517 = vunpack.c.l.b16 %v1289
    %v1518 = vunpack.c.h.b16 %v1289
    %v1519 = vunpack.c.l.b16 %v1290
    %v1520 = vunpack.c.l.b16 %v1291
    %v1521 = vunpack.c.h.b16 %v1291
    %v1522 = vunpack.c.l.b16 %v1292
    %v1523 = vunpack.c.l.b16 %v1293
    %v1524 = vunpack.c.h.b16 %v1293
    %v1525 = vunpack.c.l.b16 %v1294
    %v1526 = vunpack.c.l.b16 %v1295
    %v1527 = vunpack.c.h.b16 %v1295
    %v1528 = vunpack.c.l.b16 %v1296
    %v1529 = vunpack.c.l.b16 %v1297
    %v1530 = vunpack.c.h.b16 %v1297
    %v1531 = vunpack.c.l.b16 %v1298
    %v1532 = vunpack.c.l.b16 %v1299
    %v1533 = vunpack.c.h.b16 %v1299
    %v1534 = vunpack.c.l.b16 %v1300
    %v1535 = vunpack.c.l.b16 %v1301
    %v1536 = vunpack.c.h.b16 %v1301
    %v1537 = vunpack.c.l.b16 %v1302
    %v1538 = vunpack.c.l.b16 %v1303
    %v1539 = vunpack.c.h.b16 %v1303
    %v1540 = vunpack.c.l.b16 %v1304
    %v1541 = vunpack.c.l.b16 %v1305
    %v1542 = vunpack.c.h.b16 %v1305
    %v1543 = vunpack.c.l.b16 %v1306
    %v1544 = vunpack.c.l.b16 %v1307
    %v1545 = vunpack.c.h.b16 %v1307
    %v1546 = vunpack.c.l.b16 %v1308
    %v1547 = vunpack.c.l.b16 %v1309
    %v1548 = vunpack.c.h.b16 %v1309
    %v1549 = vunpack.c.l.b16 %v1310
    %v1550 = vunpack.c.l.b16 %v1311
    %v1551 = vunpack.c.h.b16 %v1311
    %v1552 = vunpack.c.l.b16 %v1312
    %v1553 = vunpack.c.l.b16 %v1313
    %v1554 = vunpack.c.h.b16 %v1313
    %v1555 = vunpack.c.l.b16 %v1314
    %v1556 = vunpack.c.l.b16 %v1315
    %v1557 = vunpack.c.h.b16 %v1315
    %v1558 = vunpack.c.l.b16 %v1316
    %v1559 = vunpack.c.l.b16 %v1317
    %v1560 = vunpack.c.h.b16 %v1317
    %v1561 = vunpack.c.l.b16 %v1318
    %v1562 = vunpack.c.l.b16 %v1319
    %v1563 = vunpack.c.h.b16 %v1319
    %v1564 = vunpack.c.l.b16 %v1320
    %v1565 = vunpack.c.l.b16 %v1321
    %v1566 = vunpack.c.h.b16 %v1321
    %v1567 = vunpack.c.l.b16 %v1322
    %v1568 = vunpack.c.l.b16 %v1323
    %v1569 = vunpack.c.h.b16 %v1323
    %v1570 = vunpack.c.l.b16 %v1324
    %v1571 = vunpack.c.l.b16 %v1325
    %v1572 = vunpack.c.h.b16 %v1325
    %v1573 = vunpack.c.l.b16 %v1326
    %v1574 = vunpack.c.l.b16 %v1327
    %v1575 = vunpack.c.h.b16 %v1327
    %v1576 = vunpack.c.l.b16 %v1328
    %v1577 = vunpack.c.l.b16 %v1329
    %v1578 = vunpack.c.h.b16 %v1329
    %v1579 = vunpack.c.l.b16 %v1330
    %v1580 = vunpack.c.l.b16 %v1331
    %v1581 = vunpack.c.h.b16 %v1331
    %v1582 = vunpack.c.l.b16 %v1332
    %v1583 = vunpack.c.l.b16 %v1333
    %v1584 = vunpack.c.h.b16 %v1333
    %v1585 = vunpack.c.l.b16 %v1334
    %v1586 = vunpack.c.l.b16 %v1335
    %v1587 = vunpack.c.h.b16 %v1335
    %v1588 = vunpack.c.l.b16 %v1336
    %v1589 = vunpack.c.l.b16 %v1337
    %v1590 = vunpack.c.h.b16 %v1337
    %v1591 = vunpack.c.l.b16 %v1338
    %v1592 = vunpack.c.l.b16 %v1339
    %v1593 = vunpack.c.h.b16 %v1339
    %v1594 = vunpack.c.l.b16 %v1340
    %v1595 = vunpack.c.l.b16 %v1341
    %v1596 = vunpack.c.h.b16 %v1341
    %v1597 = vunpack.c.l.b16 %v1342
    %v1598 = vunpack.c.l.b16 %v1343
    %v1599 = vunpack.c.h.b16 %v1343
    %v1600 = vunpack.c.l.b16 %v1344
    %v1601 = vunpack.c.l.b16 %v1345
    %v1602 = vunpack.c.h.b16 %v1345
    %v1603 = vunpack.c.l.b16 %v1346
    %v1604 = vunpack.c.l.b16 %v1347
    %v1605 = vunpack.c.h.b16 %v1347
    %v1606 = vunpack.c.l.b16 %v1348
    %v1607 = vpack.c.b16 %v1466, %v1463
    %v1608 = vpack.c.b16 %v1467, %v1464
    %v1609 = vpack.c.b16 %v1468, %v1465
    %v1610 = vpack.c.b16 %v1472, %v1469
    %v1611 = vpack.c.b16 %v1473, %v1470
    %v1612 = vpack.c.b16 %v1474, %v1471
    %v1613 = vpack.c.b16 %v1478, %v1475
    %v1614 = vpack.c.b16 %v1479, %v1476
    %v1615 = vpack.c.b16 %v1480, %v1477
    %v1616 = vpack.c.b16 %v1484, %v1481
    %v1617 = vpack.c.b16 %v1485, %v1482
    %v1618 = vpack.c.b16 %v1486, %v1483
    %v1619 = vpack.c.b16 %v1490, %v1487
    %v1620 = vpack.c.b16 %v1491, %v1488
    %v1621 = vpack.c.b16 %v1492, %v1489
    %v1622 = vpack.c.b16 %v1496, %v1493
    %v1623 = vpack.c.b16 %v1497, %v1494
    %v1624 = vpack.c.b16 %v1498, %v1495
    %v1625 = vpack.c.b16 %v1502, %v1499
    %v1626 = vpack.c.b16 %v1503, %v1500
    %v1627 = vpack.c.b16 %v1504, %v1501
    %v1628 = vpack.c.b16 %v1508, %v1505
    %v1629 = vpack.c.b16 %v1509, %v1506
    %v1630 = vpack.c.b16 %v1510, %v1507
    %v1631 = vpack.c.b16 %v1514, %v1511
    %v1632 = vpack.c.b16 %v1515, %v1512
    %v1633 = vpack.c.b16 %v1516, %v1513
    %v1634 = vpack.c.b16 %v1520, %v1517
    %v1635 = vpack.c.b16 %v1521, %v1518
    %v1636 = vpack.c.b16 %v1522, %v1519
    %v1637 = vpack.c.b16 %v1526, %v1523
    %v1638 = vpack.c.b16 %v1527, %v1524
    %v1639 = vpack.c.b16 %v1528, %v1525
    %v1640 = vpack.c.b16 %v1532, %v1529
    %v1641 = vpack.c.b16 %v1533, %v1530
    %v1642 = vpack.c.b16 %v1534, %v1531
    %v1643 = vpack.c.b16 %v1538, %v1535
    %v1644 = vpack.c.b16 %v1539, %v1536
    %v1645 = vpack.c.b16 %v1540, %v1537
    %v1646 = vpack.c.b16 %v1544, %v1541
    %v1647 = vpack.c.b16 %v1545, %v1542
    %v1648 = vpack.c.b16 %v1546, %v1543
    %v1649 = vpack.c.b16 %v1550, %v1547
    %v1650 = vpack.c.b16 %v1551, %v1548
    %v1651 = vpack.c.b16 %v1552, %v1549
    %v1652 = vpack.c.b16 %v1556, %v1553
    %v1653 = vpack.c.b16 %v1557, %v1554
    %v1654 = vpack.c.b16 %v1558, %v1555
    %v1655 = vpack.c.b16 %v1562, %v1559
    %v1656 = vpack.c.b16 %v1563, %v1560
    %v1657 = vpack.c.b16 %v1564, %v1561
    %v1658 = vpack.c.b16 %v1568, %v1565
    %v1659 = vpack.c.b16 %v1569, %v1566
    %v1660 = vpack.c.b16 %v1570, %v1567
    %v1661 = vpack.c.b16 %v1574, %v1571
    %v1662 = vpack.c.b16 %v1575, %v1572
    %v1663 = vpack.c.b16 %v1576, %v1573
    %v1664 = vpack.c.b16 %v1580, %v1577
    %v1665 = vpack.c.b16 %v1581, %v1578
    %v1666 = vpack.c.b16 %v1582, %v1579
    %v1667 = vpack.c.b16 %v1586, %v1583
    %v1668 = vpack.c.b16 %v1587, %v1584
    %v1669 = vpack.c.b16 %v1588, %v1585
    %v1670 = vpack.c.b16 %v1592, %v1589
    %v1671 = vpack.c.b16 %v1593, %v1590
    %v1672 = vpack.c.b16 %v1594, %v1591
    %v1673 = vpack.c.b16 %v1598, %v1595
    %v1674 = vpack.c.b16 %v1599, %v1596
    %v1675 = vpack.c.b16 %v1600, %v1597
    %v1676 = vpack.c.b16 %v1604, %v1601
    %v1677 = vpack.c.b16 %v1605, %v1602
    %v1678 = vpack.c.b16 %v1606, %v1603
    %1751 = vmatprep.subr.bf16.mxu0 %v1608
    %1752 = vmatpush1.bf16.msra.mxu0 %v1607
    %1753 = vmatprep.subr.bf16.mxu0 %v1611
    %1754 = vmatpush1.bf16.msra.mxu0 %v1610
    %1755 = vmatprep.subr.bf16.mxu0 %v1614
    %1756 = vmatpush1.bf16.msra.mxu0 %v1613
    %1757 = vmatprep.subr.bf16.mxu0 %v1617
    %1758 = vmatpush1.bf16.msra.mxu0 %v1616
    %1759 = vmatprep.subr.bf16.mxu0 %v1620
    %1760 = vmatpush1.bf16.msra.mxu0 %v1619
    %1761 = vmatprep.subr.bf16.mxu0 %v1623
    %1762 = vmatpush1.bf16.msra.mxu0 %v1622
    %1763 = vmatprep.subr.bf16.mxu0 %v1626
    %1764 = vmatpush1.bf16.msra.mxu0 %v1625
    %1765 = vmatprep.subr.bf16.mxu0 %v1629
    %1766 = vmatpush1.bf16.msra.mxu0 %v1628
    %1767 = vmatprep.subr.bf16.mxu0 %v1632
    %1768 = vmatpush1.bf16.msra.mxu0 %v1631
    %1769 = vmatprep.subr.bf16.mxu0 %v1635
    %1770 = vmatpush1.bf16.msra.mxu0 %v1634
    %1771 = vmatprep.subr.bf16.mxu0 %v1638
    %1772 = vmatpush1.bf16.msra.mxu0 %v1637
    %1773 = vmatprep.subr.bf16.mxu0 %v1641
    %1774 = vmatpush1.bf16.msra.mxu0 %v1640
    %1775 = vmatprep.subr.bf16.mxu0 %v1644
    %1776 = vmatpush1.bf16.msra.mxu0 %v1643
    %1777 = vmatprep.subr.bf16.mxu0 %v1647
    %1778 = vmatpush1.bf16.msra.mxu0 %v1646
    %1779 = vmatprep.subr.bf16.mxu0 %v1650
    %1780 = vmatpush1.bf16.msra.mxu0 %v1649
    %1781 = vmatprep.subr.bf16.mxu0 %v1653
    %1782 = vmatpush1.bf16.msra.mxu0 %v1652
    %1783 = vmatprep.mubr.bf16.mxu0 %v1251
    %1784 = vmatmul.mubr.bf16.gmra.mrb[0].mxu0 %v1250
    %v1785 = vpop.f32.mrb[0].mxu0
    %v1786 = vadd.f32 %v1355, %v1785
    %v1787 = vpop.f32.mrb[0].mxu0
    %v1788 = vadd.f32 %v1359, %v1787
    %v1789 = vpop.f32.mrb[0].mxu0
    %v1790 = vpop.f32.mrb[0].mxu0
    %1791 = vdwg.mxu0
    %1792 = vmatprep.subr.bf16.mxu0 %v1656
    %1793 = vmatpush1.bf16.msra.mxu0 %v1655
    %1794 = vmatprep.subr.bf16.mxu0 %v1659
    %1795 = vmatpush1.bf16.msra.mxu0 %v1658
    %1796 = vmatprep.subr.bf16.mxu0 %v1662
    %1797 = vmatpush1.bf16.msra.mxu0 %v1661
    %1798 = vmatprep.subr.bf16.mxu0 %v1665
    %1799 = vmatpush1.bf16.msra.mxu0 %v1664
    %1800 = vmatprep.subr.bf16.mxu0 %v1668
    %1801 = vmatpush1.bf16.msra.mxu0 %v1667
    %1802 = vmatprep.subr.bf16.mxu0 %v1671
    %1803 = vmatpush1.bf16.msra.mxu0 %v1670
    %1804 = vmatprep.subr.bf16.mxu0 %v1674
    %1805 = vmatpush1.bf16.msra.mxu0 %v1673
    %1806 = vmatprep.subr.bf16.mxu0 %v1677
    %1807 = vmatpush1.bf16.msra.mxu0 %v1676
    %1808 = vmatprep.subr.bf16.mxu0 0
    %1809 = vmatpush1.bf16.msra.mxu0 0
    %1810 = vmatprep.subr.bf16.mxu0 0
    %1811 = vmatpush1.bf16.msra.mxu0 0
    %1812 = vmatprep.subr.bf16.mxu0 0
    %1813 = vmatpush1.bf16.msra.mxu0 0
    %1814 = vmatprep.subr.bf16.mxu0 0
    %1815 = vmatpush1.bf16.msra.mxu0 0
    %1816 = vmatprep.subr.bf16.mxu0 0
    %1817 = vmatpush1.bf16.msra.mxu0 0
    %1818 = vmatprep.subr.bf16.mxu0 0
    %1819 = vmatpush1.bf16.msra.mxu0 0
    %1820 = vmatprep.subr.bf16.mxu0 0
    %1821 = vmatpush1.bf16.msra.mxu0 0
    %1822 = vmatprep.subr.bf16.mxu0 0
    %1823 = vmatpush1.bf16.msra.mxu0 0
    %1824 = vmatprep.mubr.bf16.mxu0 0
    %1825 = vmatmul.mubr.bf16.gmra.mrb[0].mxu0 %v1252
    %v1826 = vpop.f32.mrb[0].mxu0
    %v1827 = vadd.f32 %v1786, %v1826
    %v1828 = vpop.f32.mrb[0].mxu0
    %v1829 = vadd.f32 %v1788, %v1828
    %v1830 = vpop.f32.mrb[0].mxu0
    %v1831 = vpop.f32.mrb[0].mxu0
    %1832 = vdwg.mxu0
    %1833 = vmatprep.subr.bf16.mxu0 0
    %1834 = vmatpush1.bf16.msra.mxu0 %v1609
    %1835 = vmatprep.subr.bf16.mxu0 0
    %1836 = vmatpush1.bf16.msra.mxu0 %v1612
    %1837 = vmatprep.subr.bf16.mxu0 0
    %1838 = vmatpush1.bf16.msra.mxu0 %v1615
    %1839 = vmatprep.subr.bf16.mxu0 0
    %1840 = vmatpush1.bf16.msra.mxu0 %v1618
    %1841 = vmatprep.subr.bf16.mxu0 0
    %1842 = vmatpush1.bf16.msra.mxu0 %v1621
    %1843 = vmatprep.subr.bf16.mxu0 0
    %1844 = vmatpush1.bf16.msra.mxu0 %v1624
    %1845 = vmatprep.subr.bf16.mxu0 0
    %1846 = vmatpush1.bf16.msra.mxu0 %v1627
    %1847 = vmatprep.subr.bf16.mxu0 0
    %1848 = vmatpush1.bf16.msra.mxu0 %v1630
    %1849 = vmatprep.subr.bf16.mxu0 0
    %1850 = vmatpush1.bf16.msra.mxu0 %v1633
    %1851 = vmatprep.subr.bf16.mxu0 0
    %1852 = vmatpush1.bf16.msra.mxu0 %v1636
    %1853 = vmatprep.subr.bf16.mxu0 0
    %1854 = vmatpush1.bf16.msra.mxu0 %v1639
    %1855 = vmatprep.subr.bf16.mxu0 0
    %1856 = vmatpush1.bf16.msra.mxu0 %v1642
    %1857 = vmatprep.subr.bf16.mxu0 0
    %1858 = vmatpush1.bf16.msra.mxu0 %v1645
    %1859 = vmatprep.subr.bf16.mxu0 0
    %1860 = vmatpush1.bf16.msra.mxu0 %v1648
    %1861 = vmatprep.subr.bf16.mxu0 0
    %1862 = vmatpush1.bf16.msra.mxu0 %v1651
    %1863 = vmatprep.subr.bf16.mxu0 0
    %1864 = vmatpush1.bf16.msra.mxu0 %v1654
    %1865 = vmatprep.mubr.bf16.mxu0 %v1251
    %1866 = vmatmul.mubr.bf16.gmra.mrb[0].mxu0 %v1250
    %v1867 = vpop.f32.mrb[0].mxu0
    %v1868 = vadd.f32 %v1363, %v1867
    %v1869 = vpop.f32.mrb[0].mxu0
    %v1870 = vpop.f32.mrb[0].mxu0
    %v1871 = vpop.f32.mrb[0].mxu0
    %1872 = vdwg.mxu0
    %1873 = vmatprep.subr.bf16.mxu0 0
    %1874 = vmatpush1.bf16.msra.mxu0 %v1657
    %1875 = vmatprep.subr.bf16.mxu0 0
    %1876 = vmatpush1.bf16.msra.mxu0 %v1660
    %1877 = vmatprep.subr.bf16.mxu0 0
    %1878 = vmatpush1.bf16.msra.mxu0 %v1663
    %1879 = vmatprep.subr.bf16.mxu0 0
    %1880 = vmatpush1.bf16.msra.mxu0 %v1666
    %1881 = vmatprep.subr.bf16.mxu0 0
    %1882 = vmatpush1.bf16.msra.mxu0 %v1669
    %1883 = vmatprep.subr.bf16.mxu0 0
    %1884 = vmatpush1.bf16.msra.mxu0 %v1672
    %1885 = vmatprep.subr.bf16.mxu0 0
    %1886 = vmatpush1.bf16.msra.mxu0 %v1675
    %1887 = vmatprep.subr.bf16.mxu0 0
    %1888 = vmatpush1.bf16.msra.mxu0 %v1678
    %1889 = vmatprep.subr.bf16.mxu0 0
    %1890 = vmatpush1.bf16.msra.mxu0 0
    %1891 = vmatprep.subr.bf16.mxu0 0
    %1892 = vmatpush1.bf16.msra.mxu0 0
    %1893 = vmatprep.subr.bf16.mxu0 0
    %1894 = vmatpush1.bf16.msra.mxu0 0
    %1895 = vmatprep.subr.bf16.mxu0 0
    %1896 = vmatpush1.bf16.msra.mxu0 0
    %1897 = vmatprep.subr.bf16.mxu0 0
    %1898 = vmatpush1.bf16.msra.mxu0 0
    %1899 = vmatprep.subr.bf16.mxu0 0
    %1900 = vmatpush1.bf16.msra.mxu0 0
    %1901 = vmatprep.subr.bf16.mxu0 0
    %1902 = vmatpush1.bf16.msra.mxu0 0
    %1903 = vmatprep.subr.bf16.mxu0 0
    %1904 = vmatpush1.bf16.msra.mxu0 0
    %1905 = vmatprep.mubr.bf16.mxu0 0
    %1906 = vmatmul.mubr.bf16.gmra.mrb[0].mxu0 %v1252
    %v1907 = vpop.f32.mrb[0].mxu0
    %v1908 = vadd.f32 %v1868, %v1907
    %v1909 = vpop.f32.mrb[0].mxu0
    %v1910 = vpop.f32.mrb[0].mxu0
    %v1911 = vpop.f32.mrb[0].mxu0
    %1912 = vdwg.mxu0
    %s1913 = scalar_lea.vmem [#allocation5], 25
    %v1914 = vld [vmem:[%s1913] ss:$8 sm:$0x7]
    %s1915 = scalar_lea.vmem [#allocation5], 26
    %v1916 = vld [vmem:[%s1915] ss:$8 sm:$0x7]
    %v1917 = vrot.slane %v1827, 4
    %v1918 = vadd.f32 %v1827, %v1917
    %v1919 = vrot.slane %v1918, 2
    %v1920 = vadd.f32 %v1918, %v1919
    %v1921 = vrot.slane %v1920, 1
    %v1922 = vadd.f32 %v1920, %v1921
    %v1923 = vrot.slane %v1829, 4
    %v1924 = vadd.f32 %v1829, %v1923
    %v1925 = vrot.slane %v1924, 2
    %v1926 = vadd.f32 %v1924, %v1925
    %v1927 = vrot.slane %v1926, 1
    %v1928 = vadd.f32 %v1926, %v1927
    %v1929 = vrot.slane %v1908, 4
    %v1930 = vadd.f32 %v1908, %v1929
    %v1931 = vrot.slane %v1930, 2
    %v1932 = vadd.f32 %v1930, %v1931
    %v1933 = vrot.slane %v1932, 1
    %v1934 = vadd.f32 %v1932, %v1933
    %v1935 = vmul.f32 %v1922, 0.125
    %v1936 = vmul.f32 %v1928, 0.125
    %v1937 = vmul.f32 %v1934, 0.125
    %v1938 = vmul.f32 %v1827, %v1827
    %v1939 = vmul.f32 %v1829, %v1829
    %v1940 = vmul.f32 %v1908, %v1908
    %v1941 = vrot.slane %v1938, 4
    %v1942 = vadd.f32 %v1938, %v1941
    %v1943 = vrot.slane %v1942, 2
    %v1944 = vadd.f32 %v1942, %v1943
    %v1945 = vrot.slane %v1944, 1
    %v1946 = vadd.f32 %v1944, %v1945
    %v1947 = vrot.slane %v1939, 4
    %v1948 = vadd.f32 %v1939, %v1947
    %v1949 = vrot.slane %v1948, 2
    %v1950 = vadd.f32 %v1948, %v1949
    %v1951 = vrot.slane %v1950, 1
    %v1952 = vadd.f32 %v1950, %v1951
    %v1953 = vrot.slane %v1940, 4
    %v1954 = vadd.f32 %v1940, %v1953
    %v1955 = vrot.slane %v1954, 2
    %v1956 = vadd.f32 %v1954, %v1955
    %v1957 = vrot.slane %v1956, 1
    %v1958 = vadd.f32 %v1956, %v1957
    %v1959 = vmul.f32 %v1946, 0.125
    %v1960 = vmul.f32 %v1952, 0.125
    %v1961 = vmul.f32 %v1958, 0.125
    %v1962 = vmul.f32 %v1935, %v1935
    %v1963 = vmul.f32 %v1936, %v1936
    %v1964 = vmul.f32 %v1937, %v1937
    %v1965 = vsub.f32 %v1959, %v1962
    %v1966 = vsub.f32 %v1960, %v1963
    %v1967 = vsub.f32 %v1961, %v1964
    %v1968 = vmax.f32 %v1965, 0.0
    %v1969 = vmax.f32 %v1966, 0.0
    %v1970 = vmax.f32 %v1967, 0.0
    %v1971 = vadd.f32 %v1968, 1e-05
    %v1972 = vadd.f32 %v1969, 1e-05
    %v1973 = vadd.f32 %v1970, 1e-05
    %v1974 = vrsqrt.pop %v1971
    %v1975 = vrsqrt.pop %v1972
    %v1976 = vrsqrt.pop %v1973
    %v1980 = vcombine.low %v1974, %v1975
    %v1982 = vunpack.c.l.s4 1966171168
    %v1983 = vunpack.c.0.s8 %v1982
    %v1984 = vlaneseq
    %v1985 = vshrl.u32 %v1984, 7
    %v1986 = vsub.s32 %v1983, %v1985
    %v1987 = vrot.slane %v1980, %v1986
    %v1989 = vunpack.c.l.s4 1966171168
    %v1990 = vunpack.c.0.s8 %v1989
    %v1991 = vlaneseq
    %v1992 = vshrl.u32 %v1991, 7
    %v1993 = vsub.s32 %v1990, %v1992
    %v1994 = vrot.slane %v1976, %v1993
    %v1995 = vcombine.low %v1987, %v1994
    %v1997 = vunpack.c.l.s4 1966171168
    %v1998 = vunpack.c.0.s8 %v1997
    %v1999 = vlaneseq
    %v2000 = vshrl.u32 %v1999, 7
    %v2001 = vsub.s32 %v1998, %v2000
    %v2002 = vrot.slane %v1995, %v2001
    %v2004 = vmul.f32 %v1914, %v2002
    %v2006 = vlaneseq
    %v2007 = vshrl.u32 %v2006, 7
    %v2008 = vsub.s32 0, %v2007
    %v2009 = vrot.slane %v2004, %v2008
    %v2010 = vlaneseq
    %v2011 = vshrl.u32 %v2010, 7
    %v2012 = vsub.s32 1, %v2011
    %v2013 = vrot.slane %v2004, %v2012
    %v2014 = vlaneseq
    %v2015 = vshrl.u32 %v2014, 7
    %v2016 = vsub.s32 2, %v2015
    %v2017 = vrot.slane %v2004, %v2016
    %v2021 = vmul.f32 %v1935, %v2009
    %v2022 = vmul.f32 %v1936, %v2013
    %v2023 = vmul.f32 %v1937, %v2017
    %v2027 = vcombine.low %v2021, %v2022
    %v2029 = vunpack.c.l.s4 1966171168
    %v2030 = vunpack.c.0.s8 %v2029
    %v2031 = vlaneseq
    %v2032 = vshrl.u32 %v2031, 7
    %v2033 = vsub.s32 %v2030, %v2032
    %v2034 = vrot.slane %v2027, %v2033
    %v2036 = vunpack.c.l.s4 1966171168
    %v2037 = vunpack.c.0.s8 %v2036
    %v2038 = vlaneseq
    %v2039 = vshrl.u32 %v2038, 7
    %v2040 = vsub.s32 %v2037, %v2039
    %v2041 = vrot.slane %v2023, %v2040
    %v2042 = vcombine.low %v2034, %v2041
    %v2044 = vunpack.c.l.s4 1966171168
    %v2045 = vunpack.c.0.s8 %v2044
    %v2046 = vlaneseq
    %v2047 = vshrl.u32 %v2046, 7
    %v2048 = vsub.s32 %v2045, %v2047
    %v2049 = vrot.slane %v2042, %v2048
    %v2051 = vsub.f32 %v1916, %v2049
    %v2052 = vmul.f32 %v1827, %v2009
    %v2053 = vmul.f32 %v1829, %v2013
    %v2054 = vmul.f32 %v1908, %v2017
    %v2056 = vlaneseq
    %v2057 = vshrl.u32 %v2056, 7
    %v2058 = vsub.s32 0, %v2057
    %v2059 = vrot.slane %v2051, %v2058
    %v2060 = vlaneseq
    %v2061 = vshrl.u32 %v2060, 7
    %v2062 = vsub.s32 1, %v2061
    %v2063 = vrot.slane %v2051, %v2062
    %v2064 = vlaneseq
    %v2065 = vshrl.u32 %v2064, 7
    %v2066 = vsub.s32 2, %v2065
    %v2067 = vrot.slane %v2051, %v2066
    %v2071 = vadd.f32 %v2052, %v2059
    %v2072 = vadd.f32 %v2053, %v2063
    %v2073 = vadd.f32 %v2054, %v2067
    %v2074 = vmax.f32 %v2071, 0.0
    %v2075 = vmax.f32 %v2072, 0.0
    %v2076 = vmax.f32 %v2073, 0.0
    %v2077 = vpack.c.bf16 %v2074, %v2074
    %v2078 = vpack.c.bf16 %v2075, %v2075
    %v2079 = vpack.c.bf16 %v2076, %v2076
    %v2080 = vld [vmem:[#allocation11] sm:$0xf]
    %v2081 = vld [vmem:[#allocation11 + $0x4] sm:$0xf]
    %v2082 = vld [vmem:[#allocation11 + $0x8] sm:$0xf]
    %v2083 = vld [vmem:[#allocation11 + $0xc] sm:$0xf]
    %v2084 = vld [vmem:[#allocation11 + $0x10] sm:$0xf]
    %v2085 = vld [vmem:[#allocation11 + $0x14] sm:$0xf]
    %v2086 = vld [vmem:[#allocation11 + $0x18] sm:$0xf]
    %v2087 = vld [vmem:[#allocation11 + $0x1c] sm:$0xf]
    %v2088 = vld [vmem:[#allocation11 + $0x20] sm:$0xf]
    %v2089 = vld [vmem:[#allocation11 + $0x24] sm:$0xf]
    %v2090 = vld [vmem:[#allocation11 + $0x28] sm:$0xf]
    %v2091 = vld [vmem:[#allocation11 + $0x2c] sm:$0xf]
    %v2092 = vld [vmem:[#allocation11 + $0x30] sm:$0xf]
    %v2093 = vld [vmem:[#allocation11 + $0x34] sm:$0xf]
    %v2094 = vld [vmem:[#allocation11 + $0x38] sm:$0xf]
    %v2095 = vld [vmem:[#allocation11 + $0x3c] sm:$0xf]
    %v2096 = vld [vmem:[#allocation11 + $0x40] sm:$0xf]
    %v2097 = vld [vmem:[#allocation11 + $0x44] sm:$0xf]
    %v2098 = vld [vmem:[#allocation11 + $0x48] sm:$0xf]
    %v2099 = vld [vmem:[#allocation11 + $0x4c] sm:$0xf]
    %v2100 = vld [vmem:[#allocation11 + $0x50] sm:$0xf]
    %v2101 = vld [vmem:[#allocation11 + $0x54] sm:$0xf]
    %v2102 = vld [vmem:[#allocation11 + $0x58] sm:$0xf]
    %v2103 = vld [vmem:[#allocation11 + $0x5c] sm:$0xf]
    %v2104 = vld [vmem:[#allocation11 + $0x60] sm:$0xf]
    %v2105 = vld [vmem:[#allocation11 + $0x64] sm:$0xf]
    %v2106 = vld [vmem:[#allocation11 + $0x68] sm:$0xf]
    %v2107 = vld [vmem:[#allocation11 + $0x6c] sm:$0xf]
    %v2108 = vld [vmem:[#allocation11 + $0x70] sm:$0xf]
    %v2109 = vld [vmem:[#allocation11 + $0x74] sm:$0xf]
    %v2110 = vld [vmem:[#allocation11 + $0x78] sm:$0xf]
    %v2111 = vld [vmem:[#allocation11 + $0x7c] sm:$0xf]
    %v2112 = vld [vmem:[#allocation11 + $0x80] sm:$0xf]
    %v2113 = vld [vmem:[#allocation11 + $0x84] sm:$0xf]
    %v2114 = vld [vmem:[#allocation11 + $0x88] sm:$0xf]
    %v2115 = vld [vmem:[#allocation11 + $0x8c] sm:$0xf]
    %v2116 = vld [vmem:[#allocation11 + $0x90] sm:$0xf]
    %v2117 = vld [vmem:[#allocation11 + $0x94] sm:$0xf]
    %v2118 = vld [vmem:[#allocation11 + $0x98] sm:$0xf]
    %v2119 = vld [vmem:[#allocation11 + $0x9c] sm:$0xf]
    %v2120 = vld [vmem:[#allocation11 + $0xa0] sm:$0xf]
    %v2121 = vld [vmem:[#allocation11 + $0xa4] sm:$0xf]
    %v2122 = vld [vmem:[#allocation11 + $0xa8] sm:$0xf]
    %v2123 = vld [vmem:[#allocation11 + $0xac] sm:$0xf]
    %v2124 = vld [vmem:[#allocation11 + $0xb0] sm:$0xf]
    %v2125 = vld [vmem:[#allocation11 + $0xb4] sm:$0xf]
    %v2126 = vld [vmem:[#allocation11 + $0xb8] sm:$0xf]
    %v2127 = vld [vmem:[#allocation11 + $0xbc] sm:$0xf]
    %v2128 = vld [vmem:[#allocation5 + $0x1b] ss:$0 sm:$0xff]
    %v2177 = vunpack.c.l.b16 %v2080
    %v2178 = vunpack.c.l.b16 %v2081
    %v2179 = vunpack.c.l.b16 %v2082
    %v2180 = vunpack.c.l.b16 %v2083
    %v2181 = vunpack.c.l.b16 %v2084
    %v2182 = vunpack.c.l.b16 %v2085
    %v2183 = vunpack.c.l.b16 %v2086
    %v2184 = vunpack.c.l.b16 %v2087
    %v2185 = vunpack.c.l.b16 %v2088
    %v2186 = vunpack.c.l.b16 %v2089
    %v2187 = vunpack.c.l.b16 %v2090
    %v2188 = vunpack.c.l.b16 %v2091
    %v2189 = vunpack.c.l.b16 %v2092
    %v2190 = vunpack.c.l.b16 %v2093
    %v2191 = vunpack.c.l.b16 %v2094
    %v2192 = vunpack.c.l.b16 %v2095
    %v2193 = vunpack.c.l.b16 %v2096
    %v2194 = vunpack.c.l.b16 %v2097
    %v2195 = vunpack.c.l.b16 %v2098
    %v2196 = vunpack.c.l.b16 %v2099
    %v2197 = vunpack.c.l.b16 %v2100
    %v2198 = vunpack.c.l.b16 %v2101
    %v2199 = vunpack.c.l.b16 %v2102
    %v2200 = vunpack.c.l.b16 %v2103
    %v2201 = vunpack.c.l.b16 %v2104
    %v2202 = vunpack.c.l.b16 %v2105
    %v2203 = vunpack.c.l.b16 %v2106
    %v2204 = vunpack.c.l.b16 %v2107
    %v2205 = vunpack.c.l.b16 %v2108
    %v2206 = vunpack.c.l.b16 %v2109
    %v2207 = vunpack.c.l.b16 %v2110
    %v2208 = vunpack.c.l.b16 %v2111
    %v2209 = vunpack.c.l.b16 %v2112
    %v2210 = vunpack.c.l.b16 %v2113
    %v2211 = vunpack.c.l.b16 %v2114
    %v2212 = vunpack.c.l.b16 %v2115
    %v2213 = vunpack.c.l.b16 %v2116
    %v2214 = vunpack.c.l.b16 %v2117
    %v2215 = vunpack.c.l.b16 %v2118
    %v2216 = vunpack.c.l.b16 %v2119
    %v2217 = vunpack.c.l.b16 %v2120
    %v2218 = vunpack.c.l.b16 %v2121
    %v2219 = vunpack.c.l.b16 %v2122
    %v2220 = vunpack.c.l.b16 %v2123
    %v2221 = vunpack.c.l.b16 %v2124
    %v2222 = vunpack.c.l.b16 %v2125
    %v2223 = vunpack.c.l.b16 %v2126
    %v2224 = vunpack.c.l.b16 %v2127
    %v2225 = vpack.c.b16 %v2178, %v2177
    %v2226 = vpack.c.b16 %v2180, %v2179
    %v2227 = vpack.c.b16 %v2182, %v2181
    %v2228 = vpack.c.b16 %v2184, %v2183
    %v2229 = vpack.c.b16 %v2186, %v2185
    %v2230 = vpack.c.b16 %v2188, %v2187
    %v2231 = vpack.c.b16 %v2190, %v2189
    %v2232 = vpack.c.b16 %v2192, %v2191
    %v2233 = vpack.c.b16 %v2194, %v2193
    %v2234 = vpack.c.b16 %v2196, %v2195
    %v2235 = vpack.c.b16 %v2198, %v2197
    %v2236 = vpack.c.b16 %v2200, %v2199
    %v2237 = vpack.c.b16 %v2202, %v2201
    %v2238 = vpack.c.b16 %v2204, %v2203
    %v2239 = vpack.c.b16 %v2206, %v2205
    %v2240 = vpack.c.b16 %v2208, %v2207
    %v2241 = vpack.c.b16 %v2210, %v2209
    %v2242 = vpack.c.b16 %v2212, %v2211
    %v2243 = vpack.c.b16 %v2214, %v2213
    %v2244 = vpack.c.b16 %v2216, %v2215
    %v2245 = vpack.c.b16 %v2218, %v2217
    %v2246 = vpack.c.b16 %v2220, %v2219
    %v2247 = vpack.c.b16 %v2222, %v2221
    %v2248 = vpack.c.b16 %v2224, %v2223
    %2273 = vmatprep.subr.bf16.mxu0 0
    %2274 = vmatpush1.bf16.msra.mxu0 %v2225
    %2275 = vmatprep.subr.bf16.mxu0 0
    %2276 = vmatpush1.bf16.msra.mxu0 %v2226
    %2277 = vmatprep.subr.bf16.mxu0 0
    %2278 = vmatpush1.bf16.msra.mxu0 %v2227
    %2279 = vmatprep.subr.bf16.mxu0 0
    %2280 = vmatpush1.bf16.msra.mxu0 %v2228
    %2281 = vmatprep.subr.bf16.mxu0 0
    %2282 = vmatpush1.bf16.msra.mxu0 %v2229
    %2283 = vmatprep.subr.bf16.mxu0 0
    %2284 = vmatpush1.bf16.msra.mxu0 %v2230
    %2285 = vmatprep.subr.bf16.mxu0 0
    %2286 = vmatpush1.bf16.msra.mxu0 %v2231
    %2287 = vmatprep.subr.bf16.mxu0 0
    %2288 = vmatpush1.bf16.msra.mxu0 %v2232
    %2289 = vmatprep.subr.bf16.mxu0 0
    %2290 = vmatpush1.bf16.msra.mxu0 %v2233
    %2291 = vmatprep.subr.bf16.mxu0 0
    %2292 = vmatpush1.bf16.msra.mxu0 %v2234
    %2293 = vmatprep.subr.bf16.mxu0 0
    %2294 = vmatpush1.bf16.msra.mxu0 %v2235
    %2295 = vmatprep.subr.bf16.mxu0 0
    %2296 = vmatpush1.bf16.msra.mxu0 %v2236
    %2297 = vmatprep.subr.bf16.mxu0 0
    %2298 = vmatpush1.bf16.msra.mxu0 %v2237
    %2299 = vmatprep.subr.bf16.mxu0 0
    %2300 = vmatpush1.bf16.msra.mxu0 %v2238
    %2301 = vmatprep.subr.bf16.mxu0 0
    %2302 = vmatpush1.bf16.msra.mxu0 %v2239
    %2303 = vmatprep.subr.bf16.mxu0 0
    %2304 = vmatpush1.bf16.msra.mxu0 %v2240
    %2305 = vmatprep.mubr.bf16.mxu0 %v2078
    %2306 = vmatmul.mubr.bf16.gmra.mrb[0].mxu0 %v2077
    %v2307 = vpop.f32.mrb[0].mxu0
    %v2308 = vadd.f32 %v2128, %v2307
    %v2309 = vpop.f32.mrb[0].mxu0
    %v2310 = vpop.f32.mrb[0].mxu0
    %v2311 = vpop.f32.mrb[0].mxu0
    %2312 = vdwg.mxu0
    %2313 = vmatprep.subr.bf16.mxu0 0
    %2314 = vmatpush1.bf16.msra.mxu0 %v2241
    %2315 = vmatprep.subr.bf16.mxu0 0
    %2316 = vmatpush1.bf16.msra.mxu0 %v2242
    %2317 = vmatprep.subr.bf16.mxu0 0
    %2318 = vmatpush1.bf16.msra.mxu0 %v2243
    %2319 = vmatprep.subr.bf16.mxu0 0
    %2320 = vmatpush1.bf16.msra.mxu0 %v2244
    %2321 = vmatprep.subr.bf16.mxu0 0
    %2322 = vmatpush1.bf16.msra.mxu0 %v2245
    %2323 = vmatprep.subr.bf16.mxu0 0
    %2324 = vmatpush1.bf16.msra.mxu0 %v2246
    %2325 = vmatprep.subr.bf16.mxu0 0
    %2326 = vmatpush1.bf16.msra.mxu0 %v2247
    %2327 = vmatprep.subr.bf16.mxu0 0
    %2328 = vmatpush1.bf16.msra.mxu0 %v2248
    %2329 = vmatprep.subr.bf16.mxu0 0
    %2330 = vmatpush1.bf16.msra.mxu0 0
    %2331 = vmatprep.subr.bf16.mxu0 0
    %2332 = vmatpush1.bf16.msra.mxu0 0
    %2333 = vmatprep.subr.bf16.mxu0 0
    %2334 = vmatpush1.bf16.msra.mxu0 0
    %2335 = vmatprep.subr.bf16.mxu0 0
    %2336 = vmatpush1.bf16.msra.mxu0 0
    %2337 = vmatprep.subr.bf16.mxu0 0
    %2338 = vmatpush1.bf16.msra.mxu0 0
    %2339 = vmatprep.subr.bf16.mxu0 0
    %2340 = vmatpush1.bf16.msra.mxu0 0
    %2341 = vmatprep.subr.bf16.mxu0 0
    %2342 = vmatpush1.bf16.msra.mxu0 0
    %2343 = vmatprep.subr.bf16.mxu0 0
    %2344 = vmatpush1.bf16.msra.mxu0 0
    %2345 = vmatprep.mubr.bf16.mxu0 0
    %2346 = vmatmul.mubr.bf16.gmra.mrb[0].mxu0 %v2079
    %v2347 = vpop.f32.mrb[0].mxu0
    %v2348 = vadd.f32 %v2308, %v2347
    %v2349 = vpop.f32.mrb[0].mxu0
    %v2350 = vpop.f32.mrb[0].mxu0
    %v2351 = vpop.f32.mrb[0].mxu0
    %2352 = vdwg.mxu0
    %2353 = vmax.xlane.f32.xlu0 %v2348
    %v2354 = vpop.xlane.xlu0 %2353
    %v2355 = vsub.f32 %v2348, %v2354
    %v2356 = vmul.f32 %v2355, 1.442695
    %v2357 = vpow.pop %v2356
    %2358 = vadd.xlane.f32.xlu0 %v2357
    %v2359 = vpop.xlane.xlu0 %2358
    %v2360 = vrcp.pop %v2359
    %v2361 = vmul.f32 %v2357, %v2360
    %2362 = vst [vmem:[#allocation13] sm:$0xff] %v2361
    // Predicated region
    $region50: #{tpu_custom_call.1} parent=1 // pred_check
      _
    $region51: #{tpu_custom_call.1} parent=1 // pred_check_branch
      %2364 = sbr.rel (0) target = $region53
    $region52: #{tpu_custom_call.1} parent=1 // pred_region
      %s2366 = ssub.s32 128, 128
      %2367 = vsyncadd [#allocation4], %s2366
      %s2369 = sshll.u32 [#allocation13], 4
      %s2370 = int_to_ptr.vmem [resolvable:$true] %s2369
      %2372 = dma.vmem_to_hbm [thread:$0]  %s2370, 128, %s6, [#allocation4]
    $region53: #{tpu_custom_call.1} parent=1 // pred_fallthru
      _
    // Predicated region
    $region54: #{tpu_custom_call.1} parent=1 // pred_check
      _
    $region55: #{tpu_custom_call.1} parent=1 // pred_check_branch
      %2374 = sbr.rel (0) target = $region57
    $region56: #{tpu_custom_call.1} parent=1 // pred_region
      %2375 = dma.done [#allocation4], 128
    $region57: #{tpu_custom_call.1} parent=1 // pred_fallthru
      _
    %2376 = vsyncpa [#allocation3], 1
    %2377 = vsyncpa [#allocation6], 1
    %2378 = vsyncpa [#allocation9], 1
    %2379 = vsyncpa [#allocation12], 1
    %2380 = vsyncpa [#allocation4], 1

</llo_original>
